<compile_context>
chip_gen: v7x
topology: tpu7x:2x2x1
jax: 0.10.0
libtpu: 0.0.40
codegen_flags: <defaults>
</compile_context>

<pallas_src>
import functools

import jax
import jax.numpy as jnp
from jax.experimental import pallas as pl
from jax.experimental.pallas import tpu as pltpu


# ------------------------- helpers -------------------------

def _round_up(x, m):
    return ((x + m - 1) // m) * m


def _pad2d(a, rows, cols):
    r, c = a.shape
    if r == rows and c == cols:
        return a
    return jnp.pad(a, ((0, rows - r), (0, cols - c)))


def _vmem_limit_bytes():
    """75% of the chip's VMEM (96 MiB on v5e/v6e, 48 MiB on v7x's 64 MiB/TC)."""
    try:
        cap = pltpu.get_tpu_info().vmem_capacity_bytes
        if not cap:
            cap = 64 * 1024 * 1024
    except Exception:
        cap = 64 * 1024 * 1024
    return int(min(cap * 3 // 4, 100 * 1024 * 1024))


def _contract_tile(fin_p):
    """Contraction tile over the input-feature dim of the XW kernel."""
    if fin_p <= 1024:
        return fin_p                       # W fully resident, single k step
    for t in (1024, 512, 256, 128):
        if fin_p % t == 0:
            return t
    return 128


# ------------------------- Pallas kernels -------------------------

def _xw_kernel(x_ref, w_ref, o_ref, acc_ref):
    """Per-layer feature transform: XW = X @ W, f32 accumulation over Fin tiles."""
    k = pl.program_id(1)

    @pl.when(k == 0)
    def _():
        acc_ref[...] = jnp.zeros_like(acc_ref)

    acc_ref[...] += jnp.dot(x_ref[...], w_ref[...],
                            preferred_element_type=jnp.float32)

    @pl.when(k == pl.num_programs(1) - 1)
    def _():
        o_ref[...] = acc_ref[...].astype(o_ref.dtype)


def _agg_kernel(xw_ref, adj_ref, s_ref, t_ref, o_ref, acc_ref, *, final):
    """Aggregation: acc += A_ik @ XW_k; finalize with folded affine + activation.

    final=False : o = relu(h * s + t)          (bias + eval-mode BN folded)
    final=True  : o = log_softmax(h * s + t)   (padded class cols carry t=-1e9)
    """
    k = pl.program_id(1)

    @pl.when(k == 0)
    def _():
        acc_ref[...] = jnp.zeros_like(acc_ref)

    acc_ref[...] += jnp.dot(adj_ref[...], xw_ref[...],
                            preferred_element_type=jnp.float32)

    @pl.when(k == pl.num_programs(1) - 1)
    def _():
        h = acc_ref[...] * s_ref[...] + t_ref[...]
        if final:
            m = jnp.max(h, axis=1, keepdims=True)
            e = jnp.exp(h - m)
            lse = jnp.log(jnp.sum(e, axis=1, keepdims=True))
            o_ref[...] = (h - m - lse).astype(o_ref.dtype)
        else:
            o_ref[...] = jnp.maximum(h, 0.0).astype(o_ref.dtype)


def _gcn_fused_kernel(*refs, num_layers):
    """Whole-network kernel for small graphs: everything resident in VMEM.

    refs = (adj, x, [w, s, t] * num_layers, out)
    """
    adj_ref, x_ref = refs[0], refs[1]
    o_ref = refs[-1]
    adj = adj_ref[...]
    h = x_ref[...]
    for l in range(num_layers):
        w_ref, s_ref, t_ref = refs[2 + 3 * l], refs[3 + 3 * l], refs[4 + 3 * l]
        xw = jnp.dot(h, w_ref[...], preferred_element_type=jnp.float32)
        z = jnp.dot(adj, xw.astype(jnp.bfloat16),
                    preferred_element_type=jnp.float32)
        z = z * s_ref[...] + t_ref[...]          # folded bias + BatchNorm (f32)
        if l < num_layers - 1:
            h = jnp.maximum(z, 0.0).astype(jnp.bfloat16)
            # dropout: no-op in eval mode
        else:
            m = jnp.max(z, axis=1, keepdims=True)
            e = jnp.exp(z - m)
            lse = jnp.log(jnp.sum(e, axis=1, keepdims=True))
            o_ref[...] = (z - m - lse).astype(o_ref.dtype)


# ------------------------- pallas_call wrappers -------------------------

def xw_matmul(x_p, w_p, *, tm, vmem_limit):
    """x_p [Np,Fin_p] bf16, w_p [Fin_p,Fout_p] bf16 -> [Np,Fout_p] bf16."""
    n_pad, fin_p = x_p.shape
    fout_p = w_p.shape[1]
    tkf = _contract_tile(fin_p)
    return pl.pallas_call(
        _xw_kernel,
        out_shape=jax.ShapeDtypeStruct((n_pad, fout_p), jnp.bfloat16),
        grid=(n_pad // tm, fin_p // tkf),
        in_specs=[
            pl.BlockSpec((tm, tkf), lambda i, k: (i, k)),       # X tile
            pl.BlockSpec((tkf, fout_p), lambda i, k: (k, 0)),   # W tile
        ],
        out_specs=pl.BlockSpec((tm, fout_p), lambda i, k: (i, 0)),
        scratch_shapes=[pltpu.VMEM((tm, fout_p), jnp.float32)],
        compiler_params=pltpu.CompilerParams(
            dimension_semantics=("parallel", "arbitrary"),
            vmem_limit_bytes=vmem_limit,
        ),
    )(x_p, w_p)


def agg_layer(xw_p, adj_p, s_p, t_p, *, final, tm, tk, vmem_limit):
    """xw_p [Np,Fout_p] bf16, adj_p [Np,Np] bf16, s/t [1,Fout_p] f32."""
    n_pad, fout_p = xw_p.shape
    out_dtype = jnp.float32 if final else jnp.bfloat16
    kernel = functools.partial(_agg_kernel, final=final)
    return pl.pallas_call(
        kernel,
        out_shape=jax.ShapeDtypeStruct((n_pad, fout_p), out_dtype),
        grid=(n_pad // tm, n_pad // tk),
        in_specs=[
            pl.BlockSpec((tk, fout_p), lambda i, k: (k, 0)),    # XW contraction tile
            pl.BlockSpec((tm, tk), lambda i, k: (i, k)),        # A_hat tile (dominant stream)
            pl.BlockSpec((1, fout_p), lambda i, k: (0, 0)),     # folded scale
            pl.BlockSpec((1, fout_p), lambda i, k: (0, 0)),     # folded shift
        ],
        out_specs=pl.BlockSpec((tm, fout_p), lambda i, k: (i, 0)),
        scratch_shapes=[pltpu.VMEM((tm, fout_p), jnp.float32)],
        compiler_params=pltpu.CompilerParams(
            dimension_semantics=("parallel", "arbitrary"),
            vmem_limit_bytes=vmem_limit,
        ),
    )(xw_p, adj_p, s_p, t_p)


# ------------------------- full forward (inference) -------------------------

def _fold_affine(b, bn, fout, fout_p):
    """Fold bias + eval-mode BatchNorm into h*s + t, zero-padded lanes."""
    gamma, beta, mean, var = bn
    s = gamma * jax.lax.rsqrt(var + 1e-5)
    t = (b - mean) * s + beta
    return _pad2d(s, 1, fout_p), _pad2d(t, 1, fout_p)


def _final_affine(b, fout, fout_p):
    """Identity scale; -1e9 shift on padded class columns masks them in log-softmax."""
    s_p = jnp.ones((1, fout_p), jnp.float32)
    t_p = jnp.full((1, fout_p), -1e9, jnp.float32).at[:, :fout].set(b)
    return s_p, t_p


def _gcn_forward_fused(x, adj, params, n_pad, vmem_limit):
    n = x.shape[0]
    convs, bns = params["convs"], params["bns"]
    num_layers = len(convs)

    adj_p = _pad2d(adj, n_pad, n_pad).astype(jnp.bfloat16)
    fin0_p = _round_up(convs[0][0].shape[0], 128)
    x_p = _pad2d(x.astype(jnp.float32), n_pad, fin0_p).astype(jnp.bfloat16)

    args = [adj_p, x_p]
    for l in range(num_layers):
        w, b = convs[l]
        fin, fout = w.shape
        fin_p, fout_p = _round_up(fin, 128), _round_up(fout, 128)
        w_p = _pad2d(w, fin_p, fout_p).astype(jnp.bfloat16)
        if l < num_layers - 1:
            s_p, t_p = _fold_affine(b, bns[l], fout, fout_p)
        else:
            s_p, t_p = _final_affine(b, fout, fout_p)
        args += [w_p, s_p, t_p]

    fout_last = convs[-1][0].shape[1]
    fout_last_p = _round_up(fout_last, 128)
    kernel = functools.partial(_gcn_fused_kernel, num_layers=num_layers)
    out_p = pl.pallas_call(
        kernel,
        out_shape=jax.ShapeDtypeStruct((n_pad, fout_last_p), jnp.float32),
        compiler_params=pltpu.CompilerParams(vmem_limit_bytes=vmem_limit),
    )(*args)
    return out_p[:n, :fout_last]


def _gcn_forward_tiled(x, adj, params, vmem_limit):
    n = x.shape[0]
    TM = TK = 512                      # multiple of 256 (v6e/v7x MXU), ~85% DMA roofline
    n_pad = _round_up(n, TM)
    adj_p = _pad2d(adj, n_pad, n_pad).astype(jnp.bfloat16)

    convs, bns = params["convs"], params["bns"]
    num_layers = len(convs)

    fin0_p = _round_up(convs[0][0].shape[0], 128)
    h_p = _pad2d(x.astype(jnp.float32), n_pad, fin0_p).astype(jnp.bfloat16)

    for l in range(num_layers):
        w, b = convs[l]
        fin, fout = w.shape
        fin_p, fout_p = _round_up(fin, 128), _round_up(fout, 128)
        w_p = _pad2d(w, fin_p, fout_p).astype(jnp.bfloat16)
        final = (l == num_layers - 1)
        if not final:
            s_p, t_p = _fold_affine(b, bns[l], fout, fout_p)
        else:
            s_p, t_p = _final_affine(b, fout, fout_p)
        xw_p = xw_matmul(h_p, w_p, tm=TM, vmem_limit=vmem_limit)       # X @ W once per layer
        h_p = agg_layer(xw_p, adj_p, s_p, t_p, final=final,
                        tm=TM, tk=TK, vmem_limit=vmem_limit)           # A_hat @ XW + epilogue
        # dropout: no-op in eval mode

    fout_last = convs[-1][0].shape[1]
    return h_p[:n, :fout_last]


def gcn_forward(x, adj, params):
    """Full GCN forward, eval mode.  x [N,Fin] f32, adj = D^-1/2 (A+I) D^-1/2 [N,N] f32."""
    n = x.shape[0]
    n128 = _round_up(n, 128)
    dims_p = [_round_up(d, 128) for w, _ in params["convs"] for d in w.shape]
    vmem_limit = _vmem_limit_bytes()
    if n128 <= 512 and max(dims_p) <= 2048:
        return _gcn_forward_fused(x, adj, params, n128, vmem_limit)
    return _gcn_forward_tiled(x, adj, params, vmem_limit)


# ------------------------- pure-JAX reference (f32) -------------------------

def gcn_reference(x, adj, params):
    h = x
    for (w, b), (gamma, beta, mean, var) in zip(params["convs"][:-1], params["bns"]):
        h = adj @ (h @ w) + b
        h = (h - mean) * jax.lax.rsqrt(var + 1e-5) * gamma + beta
        h = jnp.maximum(h, 0.0)
    w, b = params["convs"][-1]
    h = adj @ (h @ w) + b
    return jax.nn.log_softmax(h, axis=1)


# ------------------------- deterministic setup (glue) -------------------------

def init_params(key, input_dim, hidden_dim, output_dim, num_layers):
    dims = [input_dim] + [hidden_dim] * (num_layers - 1) + [output_dim]
    convs, bns = [], []
    for i in range(num_layers):
        key, kw = jax.random.split(key)
        fan_in, fan_out = dims[i], dims[i + 1]
        scale = jnp.sqrt(6.0 / (fan_in + fan_out))          # Glorot-uniform, like GCNConv
        w = jax.random.uniform(kw, (fan_in, fan_out), jnp.float32, -scale, scale)
        b = jnp.zeros((1, fan_out), jnp.float32)
        convs.append((w, b))
    for _ in range(num_layers - 1):
        key, kg, kb = jax.random.split(key, 3)
        gamma = 1.0 + 0.1 * jax.random.normal(kg, (1, hidden_dim), jnp.float32)
        beta = 0.1 * jax.random.normal(kb, (1, hidden_dim), jnp.float32)
        mean = jnp.zeros((1, hidden_dim), jnp.float32)       # default running stats
        var = jnp.ones((1, hidden_dim), jnp.float32)
        bns.append((gamma, beta, mean, var))
    return {"convs": convs, "bns": bns}


def make_norm_adj(key, n, p=0.1):
    a = (jax.random.uniform(key, (n, n)) < p).astype(jnp.float32)
    a = jnp.maximum(a, a.T)                                      # symmetric
    a = jnp.minimum(a + jnp.eye(n, dtype=jnp.float32), 1.0)      # add self loops
    deg = jnp.sum(a, axis=1)
    dinv = 1.0 / jnp.sqrt(deg)
    return a * dinv[:, None] * dinv[None, :]                     # D^-1/2 (A+I) D^-1/2


if __name__ == "__main__":
    key = jax.random.PRNGKey(0)

    # --- small graph: fully fused single-kernel path (demo shapes) ---
    key, kx, ka, kp = jax.random.split(key, 4)
    N1, IN1, HID1, OUT1, L1 = 64, 16, 32, 8, 3
    x1 = jax.random.normal(kx, (N1, IN1), jnp.float32)
    adj1 = make_norm_adj(ka, N1)
    p1 = init_params(kp, IN1, HID1, OUT1, L1)
    y1 = gcn_forward(x1, adj1, p1)
    jax.block_until_ready(y1)
    assert y1.shape == (N1, OUT1)
    r1 = gcn_reference(x1, adj1, p1)
    assert bool(jnp.all(jnp.isfinite(y1)))
    e1 = float(jnp.max(jnp.abs(y1 - r1)))
    assert e1 < 0.25, f"fused-path max abs error vs f32 reference too large: {e1}"

    # --- larger graph: tiled XW + aggregation path (TM=TK=512, 2x2 grid) ---
    key, kx2, ka2, kp2 = jax.random.split(key, 4)
    N2, IN2, HID2, OUT2, L2 = 600, 96, 64, 12, 3
    x2 = jax.random.normal(kx2, (N2, IN2), jnp.float32)
    adj2 = make_norm_adj(ka2, N2)
    p2 = init_params(kp2, IN2, HID2, OUT2, L2)
    y2 = gcn_forward(x2, adj2, p2)
    jax.block_until_ready(y2)
    assert y2.shape == (N2, OUT2)
    r2 = gcn_reference(x2, adj2, p2)
    assert bool(jnp.all(jnp.isfinite(y2)))
    e2 = float(jnp.max(jnp.abs(y2 - r2)))
    assert e2 < 0.25, f"tiled-path max abs error vs f32 reference too large: {e2}"

    print("KERNEL_OK")
</pallas_src>

<mosaic_0001>
module attributes {stable_mosaic.version = 11 : i64} {
  func.func @_gcn_fused_kernel(%arg0: memref<128x128xbf16, #tpu.memory_space<vmem>>, %arg1: memref<128x128xbf16, #tpu.memory_space<vmem>>, %arg2: memref<128x128xbf16, #tpu.memory_space<vmem>>, %arg3: memref<1x128xf32, #tpu.memory_space<vmem>>, %arg4: memref<1x128xf32, #tpu.memory_space<vmem>>, %arg5: memref<128x128xbf16, #tpu.memory_space<vmem>>, %arg6: memref<1x128xf32, #tpu.memory_space<vmem>>, %arg7: memref<1x128xf32, #tpu.memory_space<vmem>>, %arg8: memref<128x128xbf16, #tpu.memory_space<vmem>>, %arg9: memref<1x128xf32, #tpu.memory_space<vmem>>, %arg10: memref<1x128xf32, #tpu.memory_space<vmem>>, %arg11: memref<128x128xf32, #tpu.memory_space<vmem>>) attributes {dimension_semantics = [], scalar_prefetch = 0 : i64, scratch_operands = 0 : i64, tpu.core_type = #tpu.core_type<tc>} {
    %c0 = arith.constant 0 : index
    %c0_0 = arith.constant 0 : index
    %0 = vector.load %arg0[%c0, %c0_0] : memref<128x128xbf16, #tpu.memory_space<vmem>>, vector<128x128xbf16>
    %c0_1 = arith.constant 0 : index
    %c0_2 = arith.constant 0 : index
    %1 = vector.load %arg1[%c0_1, %c0_2] : memref<128x128xbf16, #tpu.memory_space<vmem>>, vector<128x128xbf16>
    %c0_3 = arith.constant 0 : index
    %c0_4 = arith.constant 0 : index
    %2 = vector.load %arg2[%c0_3, %c0_4] : memref<128x128xbf16, #tpu.memory_space<vmem>>, vector<128x128xbf16>
    %cst = arith.constant dense<0.000000e+00> : vector<128x128xf32>
    %3 = tpu.matmul %1, %2, %cst {dimension_numbers = #tpu.dot_dimension_numbers<[1], [0], [0], [1], [0, 0, 1, 1], [], []>} : vector<128x128xbf16>, vector<128x128xbf16>, vector<128x128xf32> -> vector<128x128xf32>
    %4 = arith.truncf %3 : vector<128x128xf32> to vector<128x128xbf16>
    %cst_5 = arith.constant dense<0.000000e+00> : vector<128x128xf32>
    %5 = tpu.matmul %0, %4, %cst_5 {dimension_numbers = #tpu.dot_dimension_numbers<[1], [0], [0], [1], [0, 0, 1, 1], [], []>} : vector<128x128xbf16>, vector<128x128xbf16>, vector<128x128xf32> -> vector<128x128xf32>
    %c0_6 = arith.constant 0 : index
    %c0_7 = arith.constant 0 : index
    %6 = vector.load %arg3[%c0_6, %c0_7] : memref<1x128xf32, #tpu.memory_space<vmem>>, vector<1x128xf32>
    %7 = vector.broadcast %6 : vector<1x128xf32> to vector<128x128xf32>
    %8 = arith.mulf %5, %7 : vector<128x128xf32>
    %c0_8 = arith.constant 0 : index
    %c0_9 = arith.constant 0 : index
    %9 = vector.load %arg4[%c0_8, %c0_9] : memref<1x128xf32, #tpu.memory_space<vmem>>, vector<1x128xf32>
    %10 = vector.broadcast %9 : vector<1x128xf32> to vector<128x128xf32>
    %11 = arith.addf %8, %10 : vector<128x128xf32>
    %cst_10 = arith.constant 0.000000e+00 : f32
    %12 = vector.broadcast %cst_10 : f32 to vector<128x128xf32>
    %13 = arith.maximumf %11, %12 : vector<128x128xf32>
    %14 = arith.truncf %13 : vector<128x128xf32> to vector<128x128xbf16>
    %c0_11 = arith.constant 0 : index
    %c0_12 = arith.constant 0 : index
    %15 = vector.load %arg5[%c0_11, %c0_12] : memref<128x128xbf16, #tpu.memory_space<vmem>>, vector<128x128xbf16>
    %cst_13 = arith.constant dense<0.000000e+00> : vector<128x128xf32>
    %16 = tpu.matmul %14, %15, %cst_13 {dimension_numbers = #tpu.dot_dimension_numbers<[1], [0], [0], [1], [0, 0, 1, 1], [], []>} : vector<128x128xbf16>, vector<128x128xbf16>, vector<128x128xf32> -> vector<128x128xf32>
    %17 = arith.truncf %16 : vector<128x128xf32> to vector<128x128xbf16>
    %cst_14 = arith.constant dense<0.000000e+00> : vector<128x128xf32>
    %18 = tpu.matmul %0, %17, %cst_14 {dimension_numbers = #tpu.dot_dimension_numbers<[1], [0], [0], [1], [0, 0, 1, 1], [], []>} : vector<128x128xbf16>, vector<128x128xbf16>, vector<128x128xf32> -> vector<128x128xf32>
    %c0_15 = arith.constant 0 : index
    %c0_16 = arith.constant 0 : index
    %19 = vector.load %arg6[%c0_15, %c0_16] : memref<1x128xf32, #tpu.memory_space<vmem>>, vector<1x128xf32>
    %20 = vector.broadcast %19 : vector<1x128xf32> to vector<128x128xf32>
    %21 = arith.mulf %18, %20 : vector<128x128xf32>
    %c0_17 = arith.constant 0 : index
    %c0_18 = arith.constant 0 : index
    %22 = vector.load %arg7[%c0_17, %c0_18] : memref<1x128xf32, #tpu.memory_space<vmem>>, vector<1x128xf32>
    %23 = vector.broadcast %22 : vector<1x128xf32> to vector<128x128xf32>
    %24 = arith.addf %21, %23 : vector<128x128xf32>
    %cst_19 = arith.constant 0.000000e+00 : f32
    %25 = vector.broadcast %cst_19 : f32 to vector<128x128xf32>
    %26 = arith.maximumf %24, %25 : vector<128x128xf32>
    %27 = arith.truncf %26 : vector<128x128xf32> to vector<128x128xbf16>
    %c0_20 = arith.constant 0 : index
    %c0_21 = arith.constant 0 : index
    %28 = vector.load %arg8[%c0_20, %c0_21] : memref<128x128xbf16, #tpu.memory_space<vmem>>, vector<128x128xbf16>
    %cst_22 = arith.constant dense<0.000000e+00> : vector<128x128xf32>
    %29 = tpu.matmul %27, %28, %cst_22 {dimension_numbers = #tpu.dot_dimension_numbers<[1], [0], [0], [1], [0, 0, 1, 1], [], []>} : vector<128x128xbf16>, vector<128x128xbf16>, vector<128x128xf32> -> vector<128x128xf32>
    %30 = arith.truncf %29 : vector<128x128xf32> to vector<128x128xbf16>
    %cst_23 = arith.constant dense<0.000000e+00> : vector<128x128xf32>
    %31 = tpu.matmul %0, %30, %cst_23 {dimension_numbers = #tpu.dot_dimension_numbers<[1], [0], [0], [1], [0, 0, 1, 1], [], []>} : vector<128x128xbf16>, vector<128x128xbf16>, vector<128x128xf32> -> vector<128x128xf32>
    %c0_24 = arith.constant 0 : index
    %c0_25 = arith.constant 0 : index
    %32 = vector.load %arg9[%c0_24, %c0_25] : memref<1x128xf32, #tpu.memory_space<vmem>>, vector<1x128xf32>
    %33 = vector.broadcast %32 : vector<1x128xf32> to vector<128x128xf32>
    %34 = arith.mulf %31, %33 : vector<128x128xf32>
    %c0_26 = arith.constant 0 : index
    %c0_27 = arith.constant 0 : index
    %35 = vector.load %arg10[%c0_26, %c0_27] : memref<1x128xf32, #tpu.memory_space<vmem>>, vector<1x128xf32>
    %36 = vector.broadcast %35 : vector<1x128xf32> to vector<128x128xf32>
    %37 = arith.addf %34, %36 : vector<128x128xf32>
    %cst_28 = arith.constant dense<0xFF800000> : vector<128xf32>
    %38 = vector.multi_reduction <maximumf>, %37, %cst_28 [1] : vector<128x128xf32> to vector<128xf32>
    %39 = vector.shape_cast %38 : vector<128xf32> to vector<128x1xf32>
    %40 = vector.broadcast %39 : vector<128x1xf32> to vector<128x128xf32>
    %41 = arith.subf %37, %40 : vector<128x128xf32>
    %42 = math.exp %41 : vector<128x128xf32>
    %cst_29 = arith.constant dense<0.000000e+00> : vector<128xf32>
    %43 = vector.multi_reduction <add>, %42, %cst_29 [1] : vector<128x128xf32> to vector<128xf32>
    %44 = vector.shape_cast %43 : vector<128xf32> to vector<128x1xf32>
    %45 = math.log %44 : vector<128x1xf32>
    %46 = vector.broadcast %39 : vector<128x1xf32> to vector<128x128xf32>
    %47 = arith.subf %37, %46 : vector<128x128xf32>
    %48 = vector.broadcast %45 : vector<128x1xf32> to vector<128x128xf32>
    %49 = arith.subf %47, %48 : vector<128x128xf32>
    %c0_30 = arith.constant 0 : index
    %c0_31 = arith.constant 0 : index
    %50 = vector.load %arg11[%c0_30, %c0_31] : memref<128x128xf32, #tpu.memory_space<vmem>>, vector<128x128xf32>
    tpu.vector_store %arg11[%c0_30, %c0_31], %49 {strides = array<i32>} : memref<128x128xf32, #tpu.memory_space<vmem>>, vector<128x128xf32>,
    return
  }
}

</mosaic_0001>

<llo_original>
// kernel: tpu_custom_call.1
$region0: #{tpu_custom_call.1}
  #allocation0 [shape = 'u32[]', space=smem, size = 0x4, offset = 0x4, fixed_abs, tag = 'smem constant byte address 0x4 - core index']
  #allocation1 [shape = 'u32[144,128]{1,0:T(1,128)}', space=vmem, size = 0x12000, scoped, tag = 'internal scratch']
  %s0 = inlined_call_operand.hbm [shape: bf16[128,128], index: 0, kind: input, shape index: {}]
  %s1 = inlined_call_operand.hbm [shape: bf16[128,128], index: 1, kind: input, shape index: {}]
  %s2 = inlined_call_operand.hbm [shape: bf16[128,128], index: 2, kind: input, shape index: {}]
  %s3 = inlined_call_operand.vmem [shape: f32[1,128], index: 3, kind: input, shape index: {}]
  %s4 = inlined_call_operand.vmem [shape: f32[1,128], index: 4, kind: input, shape index: {}]
  %s5 = inlined_call_operand.hbm [shape: bf16[128,128], index: 5, kind: input, shape index: {}]
  %s6 = inlined_call_operand.vmem [shape: f32[1,128], index: 6, kind: input, shape index: {}]
  %s7 = inlined_call_operand.vmem [shape: f32[1,128], index: 7, kind: input, shape index: {}]
  %s8 = inlined_call_operand.hbm [shape: bf16[128,128], index: 8, kind: input, shape index: {}]
  %s9 = inlined_call_operand.vmem [shape: f32[1,128], index: 9, kind: input, shape index: {}]
  %s10 = inlined_call_operand.vmem [shape: f32[1,128], index: 10, kind: input, shape index: {}]
  %s11 = inlined_call_operand.hbm [shape: f32[128,128], index: 11, kind: output, shape index: {}]
  %s12 = sld [smem:[#allocation0]]
  $region74: #{tpu_custom_call.1} parent=0
    _
  %s14 = ssub.s32 1, %s12
  %s15 = scalar_select 0, %s14, %s12
  $region1: #{tpu_custom_call.1} parent=0
    #allocation2 [shape = 'u8[32768]{0}', space=vmem, size = 0x8000, scoped, tag = 'input window, operand 0, single buffered']
    #allocation3 [shape = 's32[1]{0}', space=sflag, size = 0x4, scoped, tag = 'scoped memory for tpu_custom_call.1']
    #allocation4 [shape = 's32[1]{0}', space=sflag, size = 0x4, scoped, tag = 'scoped memory for tpu_custom_call.1']
    #allocation5 [shape = 'u8[32768]{0}', space=vmem, size = 0x8000, scoped, tag = 'input window, operand 1, single buffered']
    #allocation6 [shape = 's32[1]{0}', space=sflag, size = 0x4, scoped, tag = 'scoped memory for tpu_custom_call.1']
    #allocation7 [shape = 'u8[32768]{0}', space=vmem, size = 0x8000, scoped, tag = 'input window, operand 2, single buffered']
    #allocation8 [shape = 'u8[32768]{0}', space=vmem, size = 0x8000, scoped, tag = 'input window, operand 5, single buffered']
    #allocation9 [shape = 's32[1]{0}', space=sflag, size = 0x4, scoped, tag = 'scoped memory for tpu_custom_call.1']
    #allocation10 [shape = 'u8[32768]{0}', space=vmem, size = 0x8000, scoped, tag = 'input window, operand 8, single buffered']
    #allocation11 [shape = 'u8[65536]{0}', space=vmem, size = 0x10000, scoped, tag = 'output window, operand 0, single buffered']
    %16 = vsyncpa [#allocation3], 0
    %17 = vsyncpa [#allocation6], 0
    %18 = vsyncpa [#allocation9], 0
    %19 = vsyncpa [#allocation4], 0
    // Predicated region
    $region2: #{tpu_custom_call.1} parent=1 // pred_check
      _
    $region3: #{tpu_custom_call.1} parent=1 // pred_check_branch
      %21 = sbr.rel (0) target = $region5
    $region4: #{tpu_custom_call.1} parent=1 // pred_region
      %s23 = ssub.s32 1024, 1024
      %24 = vsyncadd [#allocation3], %s23
      %s25 = sshll.u32 [#allocation2], 4
      %s26 = int_to_ptr.vmem [resolvable:$true] %s25
      %31 = dma.hbm_to_vmem [thread:$0]  %s0, 1024, %s26, [#allocation3], 64, 64, 4
    $region5: #{tpu_custom_call.1} parent=1 // pred_fallthru
      _
    // Predicated region
    $region6: #{tpu_custom_call.1} parent=1 // pred_check
      _
    $region7: #{tpu_custom_call.1} parent=1 // pred_check_branch
      %33 = sbr.rel (0) target = $region9
    $region8: #{tpu_custom_call.1} parent=1 // pred_region
      %s35 = ssub.s32 1024, 1024
      %36 = vsyncadd [#allocation6], %s35
      %s37 = sshll.u32 [#allocation5], 4
      %s38 = int_to_ptr.vmem [resolvable:$true] %s37
      %43 = dma.hbm_to_vmem [thread:$0]  %s1, 1024, %s38, [#allocation6], 64, 64, 4
    $region9: #{tpu_custom_call.1} parent=1 // pred_fallthru
      _
    // Predicated region
    $region10: #{tpu_custom_call.1} parent=1 // pred_check
      _
    $region11: #{tpu_custom_call.1} parent=1 // pred_check_branch
      %45 = sbr.rel (0) target = $region13
    $region12: #{tpu_custom_call.1} parent=1 // pred_region
      %s47 = ssub.s32 1024, 1024
      %48 = vsyncadd [#allocation6], %s47
      %s49 = sshll.u32 [#allocation7], 4
      %s50 = int_to_ptr.vmem [resolvable:$true] %s49
      %55 = dma.hbm_to_vmem [thread:$0]  %s2, 1024, %s50, [#allocation6], 64, 64, 4
    $region13: #{tpu_custom_call.1} parent=1 // pred_fallthru
      _
    // Predicated region
    $region14: #{tpu_custom_call.1} parent=1 // pred_check
      _
    $region15: #{tpu_custom_call.1} parent=1 // pred_check_branch
      %57 = sbr.rel (0) target = $region17
    $region16: #{tpu_custom_call.1} parent=1 // pred_region
      _
    $region17: #{tpu_custom_call.1} parent=1 // pred_fallthru
      _
    // Predicated region
    $region18: #{tpu_custom_call.1} parent=1 // pred_check
      _
    $region19: #{tpu_custom_call.1} parent=1 // pred_check_branch
      %59 = sbr.rel (0) target = $region21
    $region20: #{tpu_custom_call.1} parent=1 // pred_region
      _
    $region21: #{tpu_custom_call.1} parent=1 // pred_fallthru
      _
    // Predicated region
    $region22: #{tpu_custom_call.1} parent=1 // pred_check
      _
    $region23: #{tpu_custom_call.1} parent=1 // pred_check_branch
      %61 = sbr.rel (0) target = $region25
    $region24: #{tpu_custom_call.1} parent=1 // pred_region
      %s63 = ssub.s32 1024, 1024
      %64 = vsyncadd [#allocation9], %s63
      %s65 = sshll.u32 [#allocation8], 4
      %s66 = int_to_ptr.vmem [resolvable:$true] %s65
      %71 = dma.hbm_to_vmem [thread:$0]  %s5, 1024, %s66, [#allocation9], 64, 64, 4
    $region25: #{tpu_custom_call.1} parent=1 // pred_fallthru
      _
    // Predicated region
    $region26: #{tpu_custom_call.1} parent=1 // pred_check
      _
    $region27: #{tpu_custom_call.1} parent=1 // pred_check_branch
      %73 = sbr.rel (0) target = $region29
    $region28: #{tpu_custom_call.1} parent=1 // pred_region
      _
    $region29: #{tpu_custom_call.1} parent=1 // pred_fallthru
      _
    // Predicated region
    $region30: #{tpu_custom_call.1} parent=1 // pred_check
      _
    $region31: #{tpu_custom_call.1} parent=1 // pred_check_branch
      %75 = sbr.rel (0) target = $region33
    $region32: #{tpu_custom_call.1} parent=1 // pred_region
      _
    $region33: #{tpu_custom_call.1} parent=1 // pred_fallthru
      _
    // Predicated region
    $region34: #{tpu_custom_call.1} parent=1 // pred_check
      _
    $region35: #{tpu_custom_call.1} parent=1 // pred_check_branch
      %77 = sbr.rel (0) target = $region37
    $region36: #{tpu_custom_call.1} parent=1 // pred_region
      %s79 = ssub.s32 1024, 1024
      %80 = vsyncadd [#allocation9], %s79
      %s81 = sshll.u32 [#allocation10], 4
      %s82 = int_to_ptr.vmem [resolvable:$true] %s81
      %87 = dma.hbm_to_vmem [thread:$0]  %s8, 1024, %s82, [#allocation9], 64, 64, 4
    $region37: #{tpu_custom_call.1} parent=1 // pred_fallthru
      _
    // Predicated region
    $region38: #{tpu_custom_call.1} parent=1 // pred_check
      _
    $region39: #{tpu_custom_call.1} parent=1 // pred_check_branch
      %89 = sbr.rel (0) target = $region41
    $region40: #{tpu_custom_call.1} parent=1 // pred_region
      _
    $region41: #{tpu_custom_call.1} parent=1 // pred_fallthru
      _
    // Predicated region
    $region42: #{tpu_custom_call.1} parent=1 // pred_check
      _
    $region43: #{tpu_custom_call.1} parent=1 // pred_check_branch
      %91 = sbr.rel (0) target = $region45
    $region44: #{tpu_custom_call.1} parent=1 // pred_region
      _
    $region45: #{tpu_custom_call.1} parent=1 // pred_fallthru
      _
    // Predicated region
    $region46: #{tpu_custom_call.1} parent=1 // pred_check
      _
    $region47: #{tpu_custom_call.1} parent=1 // pred_check_branch
      %93 = sbr.rel (0) target = $region49
    $region48: #{tpu_custom_call.1} parent=1 // pred_region
      %94 = dma.done [#allocation3], 1024
    $region49: #{tpu_custom_call.1} parent=1 // pred_fallthru
      _
    // Predicated region
    $region50: #{tpu_custom_call.1} parent=1 // pred_check
      _
    $region51: #{tpu_custom_call.1} parent=1 // pred_check_branch
      %96 = sbr.rel (0) target = $region53
    $region52: #{tpu_custom_call.1} parent=1 // pred_region
      %97 = dma.done [#allocation6], 1024
    $region53: #{tpu_custom_call.1} parent=1 // pred_fallthru
      _
    // Predicated region
    $region54: #{tpu_custom_call.1} parent=1 // pred_check
      _
    $region55: #{tpu_custom_call.1} parent=1 // pred_check_branch
      %99 = sbr.rel (0) target = $region57
    $region56: #{tpu_custom_call.1} parent=1 // pred_region
      %100 = dma.done [#allocation6], 1024
    $region57: #{tpu_custom_call.1} parent=1 // pred_fallthru
      _
    // Predicated region
    $region58: #{tpu_custom_call.1} parent=1 // pred_check
      _
    $region59: #{tpu_custom_call.1} parent=1 // pred_check_branch
      %102 = sbr.rel (0) target = $region61
    $region60: #{tpu_custom_call.1} parent=1 // pred_region
      %103 = dma.done [#allocation9], 1024
    $region61: #{tpu_custom_call.1} parent=1 // pred_fallthru
      _
    // Predicated region
    $region62: #{tpu_custom_call.1} parent=1 // pred_check
      _
    $region63: #{tpu_custom_call.1} parent=1 // pred_check_branch
      %105 = sbr.rel (0) target = $region65
    $region64: #{tpu_custom_call.1} parent=1 // pred_region
      %106 = dma.done [#allocation9], 1024
    $region65: #{tpu_custom_call.1} parent=1 // pred_fallthru
      _
    %v108 = vld [vmem:[#allocation2] sm:$0xf]
    %v109 = vld [vmem:[#allocation2 + $0x4] sm:$0xf]
    %v110 = vld [vmem:[#allocation2 + $0x8] sm:$0xf]
    %v111 = vld [vmem:[#allocation2 + $0xc] sm:$0xf]
    %v112 = vld [vmem:[#allocation2 + $0x10] sm:$0xf]
    %v113 = vld [vmem:[#allocation2 + $0x14] sm:$0xf]
    %v114 = vld [vmem:[#allocation2 + $0x18] sm:$0xf]
    %v115 = vld [vmem:[#allocation2 + $0x1c] sm:$0xf]
    %v116 = vld [vmem:[#allocation2 + $0x20] sm:$0xf]
    %v117 = vld [vmem:[#allocation2 + $0x24] sm:$0xf]
    %v118 = vld [vmem:[#allocation2 + $0x28] sm:$0xf]
    %v119 = vld [vmem:[#allocation2 + $0x2c] sm:$0xf]
    %v120 = vld [vmem:[#allocation2 + $0x30] sm:$0xf]
    %v121 = vld [vmem:[#allocation2 + $0x34] sm:$0xf]
    %v122 = vld [vmem:[#allocation2 + $0x38] sm:$0xf]
    %v123 = vld [vmem:[#allocation2 + $0x3c] sm:$0xf]
    %v124 = vld [vmem:[#allocation5] sm:$0xf]
    %v125 = vld [vmem:[#allocation5 + $0x4] sm:$0xf]
    %v126 = vld [vmem:[#allocation5 + $0x8] sm:$0xf]
    %v127 = vld [vmem:[#allocation5 + $0xc] sm:$0xf]
    %v128 = vld [vmem:[#allocation5 + $0x10] sm:$0xf]
    %v129 = vld [vmem:[#allocation5 + $0x14] sm:$0xf]
    %v130 = vld [vmem:[#allocation5 + $0x18] sm:$0xf]
    %v131 = vld [vmem:[#allocation5 + $0x1c] sm:$0xf]
    %v132 = vld [vmem:[#allocation5 + $0x20] sm:$0xf]
    %v133 = vld [vmem:[#allocation5 + $0x24] sm:$0xf]
    %v134 = vld [vmem:[#allocation5 + $0x28] sm:$0xf]
    %v135 = vld [vmem:[#allocation5 + $0x2c] sm:$0xf]
    %v136 = vld [vmem:[#allocation5 + $0x30] sm:$0xf]
    %v137 = vld [vmem:[#allocation5 + $0x34] sm:$0xf]
    %v138 = vld [vmem:[#allocation5 + $0x38] sm:$0xf]
    %v139 = vld [vmem:[#allocation5 + $0x3c] sm:$0xf]
    %v140 = vld [vmem:[#allocation7] sm:$0xf]
    %v141 = vld [vmem:[#allocation7 + $0x4] sm:$0xf]
    %v142 = vld [vmem:[#allocation7 + $0x8] sm:$0xf]
    %v143 = vld [vmem:[#allocation7 + $0xc] sm:$0xf]
    %v144 = vld [vmem:[#allocation7 + $0x10] sm:$0xf]
    %v145 = vld [vmem:[#allocation7 + $0x14] sm:$0xf]
    %v146 = vld [vmem:[#allocation7 + $0x18] sm:$0xf]
    %v147 = vld [vmem:[#allocation7 + $0x1c] sm:$0xf]
    %v148 = vld [vmem:[#allocation7 + $0x20] sm:$0xf]
    %v149 = vld [vmem:[#allocation7 + $0x24] sm:$0xf]
    %v150 = vld [vmem:[#allocation7 + $0x28] sm:$0xf]
    %v151 = vld [vmem:[#allocation7 + $0x2c] sm:$0xf]
    %v152 = vld [vmem:[#allocation7 + $0x30] sm:$0xf]
    %v153 = vld [vmem:[#allocation7 + $0x34] sm:$0xf]
    %v154 = vld [vmem:[#allocation7 + $0x38] sm:$0xf]
    %v155 = vld [vmem:[#allocation7 + $0x3c] sm:$0xf]
    %v172 = vunpack.c.l.b16 %v124
    %v173 = vunpack.c.l.b16 %v125
    %v174 = vunpack.c.l.b16 %v126
    %v175 = vunpack.c.l.b16 %v127
    %v176 = vunpack.c.l.b16 %v128
    %v177 = vunpack.c.l.b16 %v129
    %v178 = vunpack.c.l.b16 %v130
    %v179 = vunpack.c.l.b16 %v131
    %v180 = vunpack.c.l.b16 %v132
    %v181 = vunpack.c.l.b16 %v133
    %v182 = vunpack.c.l.b16 %v134
    %v183 = vunpack.c.l.b16 %v135
    %v184 = vunpack.c.l.b16 %v136
    %v185 = vunpack.c.l.b16 %v137
    %v186 = vunpack.c.l.b16 %v138
    %v187 = vunpack.c.l.b16 %v139
    %v188 = vpack.c.b16 %v173, %v172
    %v189 = vpack.c.b16 %v175, %v174
    %v190 = vpack.c.b16 %v177, %v176
    %v191 = vpack.c.b16 %v179, %v178
    %v192 = vpack.c.b16 %v181, %v180
    %v193 = vpack.c.b16 %v183, %v182
    %v194 = vpack.c.b16 %v185, %v184
    %v195 = vpack.c.b16 %v187, %v186
    %v220 = vunpack.c.l.b16 %v140
    %v221 = vunpack.c.l.b16 %v141
    %v222 = vunpack.c.l.b16 %v142
    %v223 = vunpack.c.l.b16 %v143
    %v224 = vunpack.c.l.b16 %v144
    %v225 = vunpack.c.l.b16 %v145
    %v226 = vunpack.c.l.b16 %v146
    %v227 = vunpack.c.l.b16 %v147
    %v228 = vunpack.c.l.b16 %v148
    %v229 = vunpack.c.l.b16 %v149
    %v230 = vunpack.c.l.b16 %v150
    %v231 = vunpack.c.l.b16 %v151
    %v232 = vunpack.c.l.b16 %v152
    %v233 = vunpack.c.l.b16 %v153
    %v234 = vunpack.c.l.b16 %v154
    %v235 = vunpack.c.l.b16 %v155
    %v236 = vpack.c.b16 %v221, %v220
    %v237 = vpack.c.b16 %v223, %v222
    %v238 = vpack.c.b16 %v225, %v224
    %v239 = vpack.c.b16 %v227, %v226
    %v240 = vpack.c.b16 %v229, %v228
    %v241 = vpack.c.b16 %v231, %v230
    %v242 = vpack.c.b16 %v233, %v232
    %v243 = vpack.c.b16 %v235, %v234
    %252 = vmatprep.subr.bf16.mxu0 0
    %253 = vmatpush1.bf16.msra.mxu0 %v236
    %254 = vmatprep.subr.bf16.mxu0 0
    %255 = vmatpush1.bf16.msra.mxu0 %v237
    %256 = vmatprep.subr.bf16.mxu0 0
    %257 = vmatpush1.bf16.msra.mxu0 %v238
    %258 = vmatprep.subr.bf16.mxu0 0
    %259 = vmatpush1.bf16.msra.mxu0 %v239
    %260 = vmatprep.subr.bf16.mxu0 0
    %261 = vmatpush1.bf16.msra.mxu0 %v240
    %262 = vmatprep.subr.bf16.mxu0 0
    %263 = vmatpush1.bf16.msra.mxu0 %v241
    %264 = vmatprep.subr.bf16.mxu0 0
    %265 = vmatpush1.bf16.msra.mxu0 %v242
    %266 = vmatprep.subr.bf16.mxu0 0
    %267 = vmatpush1.bf16.msra.mxu0 %v243
    %268 = vmatprep.subr.bf16.mxu0 0
    %269 = vmatpush1.bf16.msra.mxu0 0
    %270 = vmatprep.subr.bf16.mxu0 0
    %271 = vmatpush1.bf16.msra.mxu0 0
    %272 = vmatprep.subr.bf16.mxu0 0
    %273 = vmatpush1.bf16.msra.mxu0 0
    %274 = vmatprep.subr.bf16.mxu0 0
    %275 = vmatpush1.bf16.msra.mxu0 0
    %276 = vmatprep.subr.bf16.mxu0 0
    %277 = vmatpush1.bf16.msra.mxu0 0
    %278 = vmatprep.subr.bf16.mxu0 0
    %279 = vmatpush1.bf16.msra.mxu0 0
    %280 = vmatprep.subr.bf16.mxu0 0
    %281 = vmatpush1.bf16.msra.mxu0 0
    %282 = vmatprep.subr.bf16.mxu0 0
    %283 = vmatpush1.bf16.msra.mxu0 0
    %284 = vmatprep.mubr.bf16.mxu0 0
    %285 = vmatmul.mubr.bf16.gmra.mrb[0].mxu0 %v188
    %v286 = vpop.f32.mrb[0].mxu0
    %v287 = vadd.f32 0.0, %v286
    %v288 = vpop.f32.mrb[0].mxu0
    %v289 = vpop.f32.mrb[0].mxu0
    %v290 = vadd.f32 0.0, %v289
    %v291 = vpop.f32.mrb[0].mxu0
    %292 = vmatprep.mubr.bf16.mxu0 0
    %293 = vmatmul.mubr.bf16.gmra.mrb[0].mxu0 %v189
    %v294 = vpop.f32.mrb[0].mxu0
    %v295 = vadd.f32 0.0, %v294
    %v296 = vpop.f32.mrb[0].mxu0
    %v297 = vpop.f32.mrb[0].mxu0
    %v298 = vadd.f32 0.0, %v297
    %v299 = vpop.f32.mrb[0].mxu0
    %300 = vmatprep.mubr.bf16.mxu0 0
    %301 = vmatmul.mubr.bf16.gmra.mrb[0].mxu0 %v190
    %v302 = vpop.f32.mrb[0].mxu0
    %v303 = vadd.f32 0.0, %v302
    %v304 = vpop.f32.mrb[0].mxu0
    %v305 = vpop.f32.mrb[0].mxu0
    %v306 = vadd.f32 0.0, %v305
    %v307 = vpop.f32.mrb[0].mxu0
    %308 = vmatprep.mubr.bf16.mxu0 0
    %309 = vmatmul.mubr.bf16.gmra.mrb[0].mxu0 %v191
    %v310 = vpop.f32.mrb[0].mxu0
    %v311 = vadd.f32 0.0, %v310
    %v312 = vpop.f32.mrb[0].mxu0
    %v313 = vpop.f32.mrb[0].mxu0
    %v314 = vadd.f32 0.0, %v313
    %v315 = vpop.f32.mrb[0].mxu0
    %316 = vmatprep.mubr.bf16.mxu0 0
    %317 = vmatmul.mubr.bf16.gmra.mrb[0].mxu0 %v192
    %v318 = vpop.f32.mrb[0].mxu0
    %v319 = vadd.f32 0.0, %v318
    %v320 = vpop.f32.mrb[0].mxu0
    %v321 = vpop.f32.mrb[0].mxu0
    %v322 = vadd.f32 0.0, %v321
    %v323 = vpop.f32.mrb[0].mxu0
    %324 = vmatprep.mubr.bf16.mxu0 0
    %325 = vmatmul.mubr.bf16.gmra.mrb[0].mxu0 %v193
    %v326 = vpop.f32.mrb[0].mxu0
    %v327 = vadd.f32 0.0, %v326
    %v328 = vpop.f32.mrb[0].mxu0
    %v329 = vpop.f32.mrb[0].mxu0
    %v330 = vadd.f32 0.0, %v329
    %v331 = vpop.f32.mrb[0].mxu0
    %332 = vmatprep.mubr.bf16.mxu0 0
    %333 = vmatmul.mubr.bf16.gmra.mrb[0].mxu0 %v194
    %v334 = vpop.f32.mrb[0].mxu0
    %v335 = vadd.f32 0.0, %v334
    %v336 = vpop.f32.mrb[0].mxu0
    %v337 = vpop.f32.mrb[0].mxu0
    %v338 = vadd.f32 0.0, %v337
    %v339 = vpop.f32.mrb[0].mxu0
    %340 = vmatprep.mubr.bf16.mxu0 0
    %341 = vmatmul.mubr.bf16.gmra.mrb[0].mxu0 %v195
    %v342 = vpop.f32.mrb[0].mxu0
    %v343 = vadd.f32 0.0, %v342
    %v344 = vpop.f32.mrb[0].mxu0
    %v345 = vpop.f32.mrb[0].mxu0
    %v346 = vadd.f32 0.0, %v345
    %v347 = vpop.f32.mrb[0].mxu0
    %348 = vdwg.mxu0
    %v349 = vpack.c.bf16 %v290, %v287
    %v350 = vpack.c.bf16 %v298, %v295
    %v351 = vpack.c.bf16 %v306, %v303
    %v352 = vpack.c.bf16 %v314, %v311
    %v353 = vpack.c.bf16 %v322, %v319
    %v354 = vpack.c.bf16 %v330, %v327
    %v355 = vpack.c.bf16 %v338, %v335
    %v356 = vpack.c.bf16 %v346, %v343
    %v373 = vunpack.c.l.b16 %v108
    %v374 = vunpack.c.l.b16 %v109
    %v375 = vunpack.c.l.b16 %v110
    %v376 = vunpack.c.l.b16 %v111
    %v377 = vunpack.c.l.b16 %v112
    %v378 = vunpack.c.l.b16 %v113
    %v379 = vunpack.c.l.b16 %v114
    %v380 = vunpack.c.l.b16 %v115
    %v381 = vunpack.c.l.b16 %v116
    %v382 = vunpack.c.l.b16 %v117
    %v383 = vunpack.c.l.b16 %v118
    %v384 = vunpack.c.l.b16 %v119
    %v385 = vunpack.c.l.b16 %v120
    %v386 = vunpack.c.l.b16 %v121
    %v387 = vunpack.c.l.b16 %v122
    %v388 = vunpack.c.l.b16 %v123
    %v389 = vpack.c.b16 %v374, %v373
    %v390 = vpack.c.b16 %v376, %v375
    %v391 = vpack.c.b16 %v378, %v377
    %v392 = vpack.c.b16 %v380, %v379
    %v393 = vpack.c.b16 %v382, %v381
    %v394 = vpack.c.b16 %v384, %v383
    %v395 = vpack.c.b16 %v386, %v385
    %v396 = vpack.c.b16 %v388, %v387
    %405 = vmatprep.subr.bf16.mxu0 0
    %406 = vmatpush1.bf16.msra.mxu0 %v349
    %407 = vmatprep.subr.bf16.mxu0 0
    %408 = vmatpush1.bf16.msra.mxu0 %v350
    %409 = vmatprep.subr.bf16.mxu0 0
    %410 = vmatpush1.bf16.msra.mxu0 %v351
    %411 = vmatprep.subr.bf16.mxu0 0
    %412 = vmatpush1.bf16.msra.mxu0 %v352
    %413 = vmatprep.subr.bf16.mxu0 0
    %414 = vmatpush1.bf16.msra.mxu0 %v353
    %415 = vmatprep.subr.bf16.mxu0 0
    %416 = vmatpush1.bf16.msra.mxu0 %v354
    %417 = vmatprep.subr.bf16.mxu0 0
    %418 = vmatpush1.bf16.msra.mxu0 %v355
    %419 = vmatprep.subr.bf16.mxu0 0
    %420 = vmatpush1.bf16.msra.mxu0 %v356
    %421 = vmatprep.subr.bf16.mxu0 0
    %422 = vmatpush1.bf16.msra.mxu0 0
    %423 = vmatprep.subr.bf16.mxu0 0
    %424 = vmatpush1.bf16.msra.mxu0 0
    %425 = vmatprep.subr.bf16.mxu0 0
    %426 = vmatpush1.bf16.msra.mxu0 0
    %427 = vmatprep.subr.bf16.mxu0 0
    %428 = vmatpush1.bf16.msra.mxu0 0
    %429 = vmatprep.subr.bf16.mxu0 0
    %430 = vmatpush1.bf16.msra.mxu0 0
    %431 = vmatprep.subr.bf16.mxu0 0
    %432 = vmatpush1.bf16.msra.mxu0 0
    %433 = vmatprep.subr.bf16.mxu0 0
    %434 = vmatpush1.bf16.msra.mxu0 0
    %435 = vmatprep.subr.bf16.mxu0 0
    %436 = vmatpush1.bf16.msra.mxu0 0
    %437 = vmatprep.mubr.bf16.mxu0 0
    %438 = vmatmul.mubr.bf16.gmra.mrb[0].mxu0 %v389
    %v439 = vpop.f32.mrb[0].mxu0
    %v440 = vadd.f32 0.0, %v439
    %v441 = vpop.f32.mrb[0].mxu0
    %v442 = vpop.f32.mrb[0].mxu0
    %v443 = vadd.f32 0.0, %v442
    %v444 = vpop.f32.mrb[0].mxu0
    %445 = vmatprep.mubr.bf16.mxu0 0
    %446 = vmatmul.mubr.bf16.gmra.mrb[0].mxu0 %v390
    %v447 = vpop.f32.mrb[0].mxu0
    %v448 = vadd.f32 0.0, %v447
    %v449 = vpop.f32.mrb[0].mxu0
    %v450 = vpop.f32.mrb[0].mxu0
    %v451 = vadd.f32 0.0, %v450
    %v452 = vpop.f32.mrb[0].mxu0
    %453 = vmatprep.mubr.bf16.mxu0 0
    %454 = vmatmul.mubr.bf16.gmra.mrb[0].mxu0 %v391
    %v455 = vpop.f32.mrb[0].mxu0
    %v456 = vadd.f32 0.0, %v455
    %v457 = vpop.f32.mrb[0].mxu0
    %v458 = vpop.f32.mrb[0].mxu0
    %v459 = vadd.f32 0.0, %v458
    %v460 = vpop.f32.mrb[0].mxu0
    %461 = vmatprep.mubr.bf16.mxu0 0
    %462 = vmatmul.mubr.bf16.gmra.mrb[0].mxu0 %v392
    %v463 = vpop.f32.mrb[0].mxu0
    %v464 = vadd.f32 0.0, %v463
    %v465 = vpop.f32.mrb[0].mxu0
    %v466 = vpop.f32.mrb[0].mxu0
    %v467 = vadd.f32 0.0, %v466
    %v468 = vpop.f32.mrb[0].mxu0
    %469 = vmatprep.mubr.bf16.mxu0 0
    %470 = vmatmul.mubr.bf16.gmra.mrb[0].mxu0 %v393
    %v471 = vpop.f32.mrb[0].mxu0
    %v472 = vadd.f32 0.0, %v471
    %v473 = vpop.f32.mrb[0].mxu0
    %v474 = vpop.f32.mrb[0].mxu0
    %v475 = vadd.f32 0.0, %v474
    %v476 = vpop.f32.mrb[0].mxu0
    %477 = vmatprep.mubr.bf16.mxu0 0
    %478 = vmatmul.mubr.bf16.gmra.mrb[0].mxu0 %v394
    %v479 = vpop.f32.mrb[0].mxu0
    %v480 = vadd.f32 0.0, %v479
    %v481 = vpop.f32.mrb[0].mxu0
    %v482 = vpop.f32.mrb[0].mxu0
    %v483 = vadd.f32 0.0, %v482
    %v484 = vpop.f32.mrb[0].mxu0
    %485 = vmatprep.mubr.bf16.mxu0 0
    %486 = vmatmul.mubr.bf16.gmra.mrb[0].mxu0 %v395
    %v487 = vpop.f32.mrb[0].mxu0
    %v488 = vadd.f32 0.0, %v487
    %v489 = vpop.f32.mrb[0].mxu0
    %v490 = vpop.f32.mrb[0].mxu0
    %v491 = vadd.f32 0.0, %v490
    %v492 = vpop.f32.mrb[0].mxu0
    %493 = vmatprep.mubr.bf16.mxu0 0
    %494 = vmatmul.mubr.bf16.gmra.mrb[0].mxu0 %v396
    %v495 = vpop.f32.mrb[0].mxu0
    %v496 = vadd.f32 0.0, %v495
    %v497 = vpop.f32.mrb[0].mxu0
    %v498 = vpop.f32.mrb[0].mxu0
    %v499 = vadd.f32 0.0, %v498
    %v500 = vpop.f32.mrb[0].mxu0
    %501 = vdwg.mxu0
    %v502 = vld [vmem:[%s3] sm:$0x1]
    %v504 = vlaneseq
    %v505 = vshrl.u32 %v504, 7
    %v506 = vsub.s32 0, %v505
    %v507 = vrot.slane %v502, %v506
    %v509 = vmul.f32 %v440, %v507
    %v510 = vmul.f32 %v443, %v507
    %v511 = vmul.f32 %v448, %v507
    %v512 = vmul.f32 %v451, %v507
    %v513 = vmul.f32 %v456, %v507
    %v514 = vmul.f32 %v459, %v507
    %v515 = vmul.f32 %v464, %v507
    %v516 = vmul.f32 %v467, %v507
    %v517 = vmul.f32 %v472, %v507
    %v518 = vmul.f32 %v475, %v507
    %v519 = vmul.f32 %v480, %v507
    %v520 = vmul.f32 %v483, %v507
    %v521 = vmul.f32 %v488, %v507
    %v522 = vmul.f32 %v491, %v507
    %v523 = vmul.f32 %v496, %v507
    %v524 = vmul.f32 %v499, %v507
    %v525 = vld [vmem:[%s4] sm:$0x1]
    %v527 = vlaneseq
    %v528 = vshrl.u32 %v527, 7
    %v529 = vsub.s32 0, %v528
    %v530 = vrot.slane %v525, %v529
    %v532 = vadd.f32 %v509, %v530
    %v533 = vadd.f32 %v510, %v530
    %v534 = vadd.f32 %v511, %v530
    %v535 = vadd.f32 %v512, %v530
    %v536 = vadd.f32 %v513, %v530
    %v537 = vadd.f32 %v514, %v530
    %v538 = vadd.f32 %v515, %v530
    %v539 = vadd.f32 %v516, %v530
    %v540 = vadd.f32 %v517, %v530
    %v541 = vadd.f32 %v518, %v530
    %v542 = vadd.f32 %v519, %v530
    %v543 = vadd.f32 %v520, %v530
    %v544 = vadd.f32 %v521, %v530
    %v545 = vadd.f32 %v522, %v530
    %v546 = vadd.f32 %v523, %v530
    %v547 = vadd.f32 %v524, %v530
    %v548 = vmax.f32 %v532, 0.0
    %v549 = vmax.f32 %v533, 0.0
    %v550 = vmax.f32 %v534, 0.0
    %v551 = vmax.f32 %v535, 0.0
    %v552 = vmax.f32 %v536, 0.0
    %v553 = vmax.f32 %v537, 0.0
    %v554 = vmax.f32 %v538, 0.0
    %v555 = vmax.f32 %v539, 0.0
    %v556 = vmax.f32 %v540, 0.0
    %v557 = vmax.f32 %v541, 0.0
    %v558 = vmax.f32 %v542, 0.0
    %v559 = vmax.f32 %v543, 0.0
    %v560 = vmax.f32 %v544, 0.0
    %v561 = vmax.f32 %v545, 0.0
    %v562 = vmax.f32 %v546, 0.0
    %v563 = vmax.f32 %v547, 0.0
    %v564 = vpack.c.bf16 %v549, %v548
    %v565 = vpack.c.bf16 %v551, %v550
    %v566 = vpack.c.bf16 %v553, %v552
    %v567 = vpack.c.bf16 %v555, %v554
    %v568 = vpack.c.bf16 %v557, %v556
    %v569 = vpack.c.bf16 %v559, %v558
    %v570 = vpack.c.bf16 %v561, %v560
    %v571 = vpack.c.bf16 %v563, %v562
    %v572 = vld [vmem:[#allocation8] sm:$0xf]
    %v573 = vld [vmem:[#allocation8 + $0x4] sm:$0xf]
    %v574 = vld [vmem:[#allocation8 + $0x8] sm:$0xf]
    %v575 = vld [vmem:[#allocation8 + $0xc] sm:$0xf]
    %v576 = vld [vmem:[#allocation8 + $0x10] sm:$0xf]
    %v577 = vld [vmem:[#allocation8 + $0x14] sm:$0xf]
    %v578 = vld [vmem:[#allocation8 + $0x18] sm:$0xf]
    %v579 = vld [vmem:[#allocation8 + $0x1c] sm:$0xf]
    %v580 = vld [vmem:[#allocation8 + $0x20] sm:$0xf]
    %v581 = vld [vmem:[#allocation8 + $0x24] sm:$0xf]
    %v582 = vld [vmem:[#allocation8 + $0x28] sm:$0xf]
    %v583 = vld [vmem:[#allocation8 + $0x2c] sm:$0xf]
    %v584 = vld [vmem:[#allocation8 + $0x30] sm:$0xf]
    %v585 = vld [vmem:[#allocation8 + $0x34] sm:$0xf]
    %v586 = vld [vmem:[#allocation8 + $0x38] sm:$0xf]
    %v587 = vld [vmem:[#allocation8 + $0x3c] sm:$0xf]
    %v604 = vunpack.c.l.b16 %v572
    %v605 = vunpack.c.l.b16 %v573
    %v606 = vunpack.c.l.b16 %v574
    %v607 = vunpack.c.l.b16 %v575
    %v608 = vunpack.c.l.b16 %v576
    %v609 = vunpack.c.l.b16 %v577
    %v610 = vunpack.c.l.b16 %v578
    %v611 = vunpack.c.l.b16 %v579
    %v612 = vunpack.c.l.b16 %v580
    %v613 = vunpack.c.l.b16 %v581
    %v614 = vunpack.c.l.b16 %v582
    %v615 = vunpack.c.l.b16 %v583
    %v616 = vunpack.c.l.b16 %v584
    %v617 = vunpack.c.l.b16 %v585
    %v618 = vunpack.c.l.b16 %v586
    %v619 = vunpack.c.l.b16 %v587
    %v620 = vpack.c.b16 %v605, %v604
    %v621 = vpack.c.b16 %v607, %v606
    %v622 = vpack.c.b16 %v609, %v608
    %v623 = vpack.c.b16 %v611, %v610
    %v624 = vpack.c.b16 %v613, %v612
    %v625 = vpack.c.b16 %v615, %v614
    %v626 = vpack.c.b16 %v617, %v616
    %v627 = vpack.c.b16 %v619, %v618
    %636 = vmatprep.subr.bf16.mxu0 0
    %637 = vmatpush1.bf16.msra.mxu0 %v620
    %638 = vmatprep.subr.bf16.mxu0 0
    %639 = vmatpush1.bf16.msra.mxu0 %v621
    %640 = vmatprep.subr.bf16.mxu0 0
    %641 = vmatpush1.bf16.msra.mxu0 %v622
    %642 = vmatprep.subr.bf16.mxu0 0
    %643 = vmatpush1.bf16.msra.mxu0 %v623
    %644 = vmatprep.subr.bf16.mxu0 0
    %645 = vmatpush1.bf16.msra.mxu0 %v624
    %646 = vmatprep.subr.bf16.mxu0 0
    %647 = vmatpush1.bf16.msra.mxu0 %v625
    %648 = vmatprep.subr.bf16.mxu0 0
    %649 = vmatpush1.bf16.msra.mxu0 %v626
    %650 = vmatprep.subr.bf16.mxu0 0
    %651 = vmatpush1.bf16.msra.mxu0 %v627
    %652 = vmatprep.subr.bf16.mxu0 0
    %653 = vmatpush1.bf16.msra.mxu0 0
    %654 = vmatprep.subr.bf16.mxu0 0
    %655 = vmatpush1.bf16.msra.mxu0 0
    %656 = vmatprep.subr.bf16.mxu0 0
    %657 = vmatpush1.bf16.msra.mxu0 0
    %658 = vmatprep.subr.bf16.mxu0 0
    %659 = vmatpush1.bf16.msra.mxu0 0
    %660 = vmatprep.subr.bf16.mxu0 0
    %661 = vmatpush1.bf16.msra.mxu0 0
    %662 = vmatprep.subr.bf16.mxu0 0
    %663 = vmatpush1.bf16.msra.mxu0 0
    %664 = vmatprep.subr.bf16.mxu0 0
    %665 = vmatpush1.bf16.msra.mxu0 0
    %666 = vmatprep.subr.bf16.mxu0 0
    %667 = vmatpush1.bf16.msra.mxu0 0
    %668 = vmatprep.mubr.bf16.mxu0 0
    %669 = vmatmul.mubr.bf16.gmra.mrb[0].mxu0 %v564
    %v670 = vpop.f32.mrb[0].mxu0
    %v671 = vadd.f32 0.0, %v670
    %v672 = vpop.f32.mrb[0].mxu0
    %v673 = vpop.f32.mrb[0].mxu0
    %v674 = vadd.f32 0.0, %v673
    %v675 = vpop.f32.mrb[0].mxu0
    %676 = vmatprep.mubr.bf16.mxu0 0
    %677 = vmatmul.mubr.bf16.gmra.mrb[0].mxu0 %v565
    %v678 = vpop.f32.mrb[0].mxu0
    %v679 = vadd.f32 0.0, %v678
    %v680 = vpop.f32.mrb[0].mxu0
    %v681 = vpop.f32.mrb[0].mxu0
    %v682 = vadd.f32 0.0, %v681
    %v683 = vpop.f32.mrb[0].mxu0
    %684 = vmatprep.mubr.bf16.mxu0 0
    %685 = vmatmul.mubr.bf16.gmra.mrb[0].mxu0 %v566
    %v686 = vpop.f32.mrb[0].mxu0
    %v687 = vadd.f32 0.0, %v686
    %v688 = vpop.f32.mrb[0].mxu0
    %v689 = vpop.f32.mrb[0].mxu0
    %v690 = vadd.f32 0.0, %v689
    %v691 = vpop.f32.mrb[0].mxu0
    %692 = vmatprep.mubr.bf16.mxu0 0
    %693 = vmatmul.mubr.bf16.gmra.mrb[0].mxu0 %v567
    %v694 = vpop.f32.mrb[0].mxu0
    %v695 = vadd.f32 0.0, %v694
    %v696 = vpop.f32.mrb[0].mxu0
    %v697 = vpop.f32.mrb[0].mxu0
    %v698 = vadd.f32 0.0, %v697
    %v699 = vpop.f32.mrb[0].mxu0
    %700 = vmatprep.mubr.bf16.mxu0 0
    %701 = vmatmul.mubr.bf16.gmra.mrb[0].mxu0 %v568
    %v702 = vpop.f32.mrb[0].mxu0
    %v703 = vadd.f32 0.0, %v702
    %v704 = vpop.f32.mrb[0].mxu0
    %v705 = vpop.f32.mrb[0].mxu0
    %v706 = vadd.f32 0.0, %v705
    %v707 = vpop.f32.mrb[0].mxu0
    %708 = vmatprep.mubr.bf16.mxu0 0
    %709 = vmatmul.mubr.bf16.gmra.mrb[0].mxu0 %v569
    %v710 = vpop.f32.mrb[0].mxu0
    %v711 = vadd.f32 0.0, %v710
    %v712 = vpop.f32.mrb[0].mxu0
    %v713 = vpop.f32.mrb[0].mxu0
    %v714 = vadd.f32 0.0, %v713
    %v715 = vpop.f32.mrb[0].mxu0
    %716 = vmatprep.mubr.bf16.mxu0 0
    %717 = vmatmul.mubr.bf16.gmra.mrb[0].mxu0 %v570
    %v718 = vpop.f32.mrb[0].mxu0
    %v719 = vadd.f32 0.0, %v718
    %v720 = vpop.f32.mrb[0].mxu0
    %v721 = vpop.f32.mrb[0].mxu0
    %v722 = vadd.f32 0.0, %v721
    %v723 = vpop.f32.mrb[0].mxu0
    %724 = vmatprep.mubr.bf16.mxu0 0
    %725 = vmatmul.mubr.bf16.gmra.mrb[0].mxu0 %v571
    %v726 = vpop.f32.mrb[0].mxu0
    %v727 = vadd.f32 0.0, %v726
    %v728 = vpop.f32.mrb[0].mxu0
    %v729 = vpop.f32.mrb[0].mxu0
    %v730 = vadd.f32 0.0, %v729
    %v731 = vpop.f32.mrb[0].mxu0
    %732 = vdwg.mxu0
    %v733 = vpack.c.bf16 %v674, %v671
    %v734 = vpack.c.bf16 %v682, %v679
    %v735 = vpack.c.bf16 %v690, %v687
    %v736 = vpack.c.bf16 %v698, %v695
    %v737 = vpack.c.bf16 %v706, %v703
    %v738 = vpack.c.bf16 %v714, %v711
    %v739 = vpack.c.bf16 %v722, %v719
    %v740 = vpack.c.bf16 %v730, %v727
    %741 = vmatprep.subr.bf16.mxu0 0
    %742 = vmatpush1.bf16.msra.mxu0 %v733
    %743 = vmatprep.subr.bf16.mxu0 0
    %744 = vmatpush1.bf16.msra.mxu0 %v734
    %745 = vmatprep.subr.bf16.mxu0 0
    %746 = vmatpush1.bf16.msra.mxu0 %v735
    %747 = vmatprep.subr.bf16.mxu0 0
    %748 = vmatpush1.bf16.msra.mxu0 %v736
    %749 = vmatprep.subr.bf16.mxu0 0
    %750 = vmatpush1.bf16.msra.mxu0 %v737
    %751 = vmatprep.subr.bf16.mxu0 0
    %752 = vmatpush1.bf16.msra.mxu0 %v738
    %753 = vmatprep.subr.bf16.mxu0 0
    %754 = vmatpush1.bf16.msra.mxu0 %v739
    %755 = vmatprep.subr.bf16.mxu0 0
    %756 = vmatpush1.bf16.msra.mxu0 %v740
    %757 = vmatprep.subr.bf16.mxu0 0
    %758 = vmatpush1.bf16.msra.mxu0 0
    %759 = vmatprep.subr.bf16.mxu0 0
    %760 = vmatpush1.bf16.msra.mxu0 0
    %761 = vmatprep.subr.bf16.mxu0 0
    %762 = vmatpush1.bf16.msra.mxu0 0
    %763 = vmatprep.subr.bf16.mxu0 0
    %764 = vmatpush1.bf16.msra.mxu0 0
    %765 = vmatprep.subr.bf16.mxu0 0
    %766 = vmatpush1.bf16.msra.mxu0 0
    %767 = vmatprep.subr.bf16.mxu0 0
    %768 = vmatpush1.bf16.msra.mxu0 0
    %769 = vmatprep.subr.bf16.mxu0 0
    %770 = vmatpush1.bf16.msra.mxu0 0
    %771 = vmatprep.subr.bf16.mxu0 0
    %772 = vmatpush1.bf16.msra.mxu0 0
    %773 = vmatprep.mubr.bf16.mxu0 0
    %774 = vmatmul.mubr.bf16.gmra.mrb[0].mxu0 %v389
    %v775 = vpop.f32.mrb[0].mxu0
    %v776 = vadd.f32 0.0, %v775
    %v777 = vpop.f32.mrb[0].mxu0
    %v778 = vpop.f32.mrb[0].mxu0
    %v779 = vadd.f32 0.0, %v778
    %v780 = vpop.f32.mrb[0].mxu0
    %781 = vmatprep.mubr.bf16.mxu0 0
    %782 = vmatmul.mubr.bf16.gmra.mrb[0].mxu0 %v390
    %v783 = vpop.f32.mrb[0].mxu0
    %v784 = vadd.f32 0.0, %v783
    %v785 = vpop.f32.mrb[0].mxu0
    %v786 = vpop.f32.mrb[0].mxu0
    %v787 = vadd.f32 0.0, %v786
    %v788 = vpop.f32.mrb[0].mxu0
    %789 = vmatprep.mubr.bf16.mxu0 0
    %790 = vmatmul.mubr.bf16.gmra.mrb[0].mxu0 %v391
    %v791 = vpop.f32.mrb[0].mxu0
    %v792 = vadd.f32 0.0, %v791
    %v793 = vpop.f32.mrb[0].mxu0
    %v794 = vpop.f32.mrb[0].mxu0
    %v795 = vadd.f32 0.0, %v794
    %v796 = vpop.f32.mrb[0].mxu0
    %797 = vmatprep.mubr.bf16.mxu0 0
    %798 = vmatmul.mubr.bf16.gmra.mrb[0].mxu0 %v392
    %v799 = vpop.f32.mrb[0].mxu0
    %v800 = vadd.f32 0.0, %v799
    %v801 = vpop.f32.mrb[0].mxu0
    %v802 = vpop.f32.mrb[0].mxu0
    %v803 = vadd.f32 0.0, %v802
    %v804 = vpop.f32.mrb[0].mxu0
    %805 = vmatprep.mubr.bf16.mxu0 0
    %806 = vmatmul.mubr.bf16.gmra.mrb[0].mxu0 %v393
    %v807 = vpop.f32.mrb[0].mxu0
    %v808 = vadd.f32 0.0, %v807
    %v809 = vpop.f32.mrb[0].mxu0
    %v810 = vpop.f32.mrb[0].mxu0
    %v811 = vadd.f32 0.0, %v810
    %v812 = vpop.f32.mrb[0].mxu0
    %813 = vmatprep.mubr.bf16.mxu0 0
    %814 = vmatmul.mubr.bf16.gmra.mrb[0].mxu0 %v394
    %v815 = vpop.f32.mrb[0].mxu0
    %v816 = vadd.f32 0.0, %v815
    %v817 = vpop.f32.mrb[0].mxu0
    %v818 = vpop.f32.mrb[0].mxu0
    %v819 = vadd.f32 0.0, %v818
    %v820 = vpop.f32.mrb[0].mxu0
    %821 = vmatprep.mubr.bf16.mxu0 0
    %822 = vmatmul.mubr.bf16.gmra.mrb[0].mxu0 %v395
    %v823 = vpop.f32.mrb[0].mxu0
    %v824 = vadd.f32 0.0, %v823
    %v825 = vpop.f32.mrb[0].mxu0
    %v826 = vpop.f32.mrb[0].mxu0
    %v827 = vadd.f32 0.0, %v826
    %v828 = vpop.f32.mrb[0].mxu0
    %829 = vmatprep.mubr.bf16.mxu0 0
    %830 = vmatmul.mubr.bf16.gmra.mrb[0].mxu0 %v396
    %v831 = vpop.f32.mrb[0].mxu0
    %v832 = vadd.f32 0.0, %v831
    %v833 = vpop.f32.mrb[0].mxu0
    %v834 = vpop.f32.mrb[0].mxu0
    %v835 = vadd.f32 0.0, %v834
    %v836 = vpop.f32.mrb[0].mxu0
    %837 = vdwg.mxu0
    %v838 = vld [vmem:[%s6] sm:$0x1]
    %v840 = vlaneseq
    %v841 = vshrl.u32 %v840, 7
    %v842 = vsub.s32 0, %v841
    %v843 = vrot.slane %v838, %v842
    %v845 = vmul.f32 %v776, %v843
    %v846 = vmul.f32 %v779, %v843
    %v847 = vmul.f32 %v784, %v843
    %v848 = vmul.f32 %v787, %v843
    %v849 = vmul.f32 %v792, %v843
    %v850 = vmul.f32 %v795, %v843
    %v851 = vmul.f32 %v800, %v843
    %v852 = vmul.f32 %v803, %v843
    %v853 = vmul.f32 %v808, %v843
    %v854 = vmul.f32 %v811, %v843
    %v855 = vmul.f32 %v816, %v843
    %v856 = vmul.f32 %v819, %v843
    %v857 = vmul.f32 %v824, %v843
    %v858 = vmul.f32 %v827, %v843
    %v859 = vmul.f32 %v832, %v843
    %v860 = vmul.f32 %v835, %v843
    %v861 = vld [vmem:[%s7] sm:$0x1]
    %v863 = vlaneseq
    %v864 = vshrl.u32 %v863, 7
    %v865 = vsub.s32 0, %v864
    %v866 = vrot.slane %v861, %v865
    %v868 = vadd.f32 %v845, %v866
    %v869 = vadd.f32 %v846, %v866
    %v870 = vadd.f32 %v847, %v866
    %v871 = vadd.f32 %v848, %v866
    %v872 = vadd.f32 %v849, %v866
    %v873 = vadd.f32 %v850, %v866
    %v874 = vadd.f32 %v851, %v866
    %v875 = vadd.f32 %v852, %v866
    %v876 = vadd.f32 %v853, %v866
    %v877 = vadd.f32 %v854, %v866
    %v878 = vadd.f32 %v855, %v866
    %v879 = vadd.f32 %v856, %v866
    %v880 = vadd.f32 %v857, %v866
    %v881 = vadd.f32 %v858, %v866
    %v882 = vadd.f32 %v859, %v866
    %v883 = vadd.f32 %v860, %v866
    %v884 = vmax.f32 %v868, 0.0
    %v885 = vmax.f32 %v869, 0.0
    %v886 = vmax.f32 %v870, 0.0
    %v887 = vmax.f32 %v871, 0.0
    %v888 = vmax.f32 %v872, 0.0
    %v889 = vmax.f32 %v873, 0.0
    %v890 = vmax.f32 %v874, 0.0
    %v891 = vmax.f32 %v875, 0.0
    %v892 = vmax.f32 %v876, 0.0
    %v893 = vmax.f32 %v877, 0.0
    %v894 = vmax.f32 %v878, 0.0
    %v895 = vmax.f32 %v879, 0.0
    %v896 = vmax.f32 %v880, 0.0
    %v897 = vmax.f32 %v881, 0.0
    %v898 = vmax.f32 %v882, 0.0
    %v899 = vmax.f32 %v883, 0.0
    %v900 = vpack.c.bf16 %v885, %v884
    %v901 = vpack.c.bf16 %v887, %v886
    %v902 = vpack.c.bf16 %v889, %v888
    %v903 = vpack.c.bf16 %v891, %v890
    %v904 = vpack.c.bf16 %v893, %v892
    %v905 = vpack.c.bf16 %v895, %v894
    %v906 = vpack.c.bf16 %v897, %v896
    %v907 = vpack.c.bf16 %v899, %v898
    %v908 = vld [vmem:[#allocation10] sm:$0xf]
    %v909 = vld [vmem:[#allocation10 + $0x4] sm:$0xf]
    %v910 = vld [vmem:[#allocation10 + $0x8] sm:$0xf]
    %v911 = vld [vmem:[#allocation10 + $0xc] sm:$0xf]
    %v912 = vld [vmem:[#allocation10 + $0x10] sm:$0xf]
    %v913 = vld [vmem:[#allocation10 + $0x14] sm:$0xf]
    %v914 = vld [vmem:[#allocation10 + $0x18] sm:$0xf]
    %v915 = vld [vmem:[#allocation10 + $0x1c] sm:$0xf]
    %v916 = vld [vmem:[#allocation10 + $0x20] sm:$0xf]
    %v917 = vld [vmem:[#allocation10 + $0x24] sm:$0xf]
    %v918 = vld [vmem:[#allocation10 + $0x28] sm:$0xf]
    %v919 = vld [vmem:[#allocation10 + $0x2c] sm:$0xf]
    %v920 = vld [vmem:[#allocation10 + $0x30] sm:$0xf]
    %v921 = vld [vmem:[#allocation10 + $0x34] sm:$0xf]
    %v922 = vld [vmem:[#allocation10 + $0x38] sm:$0xf]
    %v923 = vld [vmem:[#allocation10 + $0x3c] sm:$0xf]
    %v940 = vunpack.c.l.b16 %v908
    %v941 = vunpack.c.l.b16 %v909
    %v942 = vunpack.c.l.b16 %v910
    %v943 = vunpack.c.l.b16 %v911
    %v944 = vunpack.c.l.b16 %v912
    %v945 = vunpack.c.l.b16 %v913
    %v946 = vunpack.c.l.b16 %v914
    %v947 = vunpack.c.l.b16 %v915
    %v948 = vunpack.c.l.b16 %v916
    %v949 = vunpack.c.l.b16 %v917
    %v950 = vunpack.c.l.b16 %v918
    %v951 = vunpack.c.l.b16 %v919
    %v952 = vunpack.c.l.b16 %v920
    %v953 = vunpack.c.l.b16 %v921
    %v954 = vunpack.c.l.b16 %v922
    %v955 = vunpack.c.l.b16 %v923
    %v956 = vpack.c.b16 %v941, %v940
    %v957 = vpack.c.b16 %v943, %v942
    %v958 = vpack.c.b16 %v945, %v944
    %v959 = vpack.c.b16 %v947, %v946
    %v960 = vpack.c.b16 %v949, %v948
    %v961 = vpack.c.b16 %v951, %v950
    %v962 = vpack.c.b16 %v953, %v952
    %v963 = vpack.c.b16 %v955, %v954
    %972 = vmatprep.subr.bf16.mxu0 0
    %973 = vmatpush1.bf16.msra.mxu0 %v956
    %974 = vmatprep.subr.bf16.mxu0 0
    %975 = vmatpush1.bf16.msra.mxu0 %v957
    %976 = vmatprep.subr.bf16.mxu0 0
    %977 = vmatpush1.bf16.msra.mxu0 %v958
    %978 = vmatprep.subr.bf16.mxu0 0
    %979 = vmatpush1.bf16.msra.mxu0 %v959
    %980 = vmatprep.subr.bf16.mxu0 0
    %981 = vmatpush1.bf16.msra.mxu0 %v960
    %982 = vmatprep.subr.bf16.mxu0 0
    %983 = vmatpush1.bf16.msra.mxu0 %v961
    %984 = vmatprep.subr.bf16.mxu0 0
    %985 = vmatpush1.bf16.msra.mxu0 %v962
    %986 = vmatprep.subr.bf16.mxu0 0
    %987 = vmatpush1.bf16.msra.mxu0 %v963
    %988 = vmatprep.subr.bf16.mxu0 0
    %989 = vmatpush1.bf16.msra.mxu0 0
    %990 = vmatprep.subr.bf16.mxu0 0
    %991 = vmatpush1.bf16.msra.mxu0 0
    %992 = vmatprep.subr.bf16.mxu0 0
    %993 = vmatpush1.bf16.msra.mxu0 0
    %994 = vmatprep.subr.bf16.mxu0 0
    %995 = vmatpush1.bf16.msra.mxu0 0
    %996 = vmatprep.subr.bf16.mxu0 0
    %997 = vmatpush1.bf16.msra.mxu0 0
    %998 = vmatprep.subr.bf16.mxu0 0
    %999 = vmatpush1.bf16.msra.mxu0 0
    %1000 = vmatprep.subr.bf16.mxu0 0
    %1001 = vmatpush1.bf16.msra.mxu0 0
    %1002 = vmatprep.subr.bf16.mxu0 0
    %1003 = vmatpush1.bf16.msra.mxu0 0
    %1004 = vmatprep.mubr.bf16.mxu0 0
    %1005 = vmatmul.mubr.bf16.gmra.mrb[0].mxu0 %v900
    %v1006 = vpop.f32.mrb[0].mxu0
    %v1007 = vadd.f32 0.0, %v1006
    %v1008 = vpop.f32.mrb[0].mxu0
    %v1009 = vpop.f32.mrb[0].mxu0
    %v1010 = vadd.f32 0.0, %v1009
    %v1011 = vpop.f32.mrb[0].mxu0
    %1012 = vmatprep.mubr.bf16.mxu0 0
    %1013 = vmatmul.mubr.bf16.gmra.mrb[0].mxu0 %v901
    %v1014 = vpop.f32.mrb[0].mxu0
    %v1015 = vadd.f32 0.0, %v1014
    %v1016 = vpop.f32.mrb[0].mxu0
    %v1017 = vpop.f32.mrb[0].mxu0
    %v1018 = vadd.f32 0.0, %v1017
    %v1019 = vpop.f32.mrb[0].mxu0
    %1020 = vmatprep.mubr.bf16.mxu0 0
    %1021 = vmatmul.mubr.bf16.gmra.mrb[0].mxu0 %v902
    %v1022 = vpop.f32.mrb[0].mxu0
    %v1023 = vadd.f32 0.0, %v1022
    %v1024 = vpop.f32.mrb[0].mxu0
    %v1025 = vpop.f32.mrb[0].mxu0
    %v1026 = vadd.f32 0.0, %v1025
    %v1027 = vpop.f32.mrb[0].mxu0
    %1028 = vmatprep.mubr.bf16.mxu0 0
    %1029 = vmatmul.mubr.bf16.gmra.mrb[0].mxu0 %v903
    %v1030 = vpop.f32.mrb[0].mxu0
    %v1031 = vadd.f32 0.0, %v1030
    %v1032 = vpop.f32.mrb[0].mxu0
    %v1033 = vpop.f32.mrb[0].mxu0
    %v1034 = vadd.f32 0.0, %v1033
    %v1035 = vpop.f32.mrb[0].mxu0
    %1036 = vmatprep.mubr.bf16.mxu0 0
    %1037 = vmatmul.mubr.bf16.gmra.mrb[0].mxu0 %v904
    %v1038 = vpop.f32.mrb[0].mxu0
    %v1039 = vadd.f32 0.0, %v1038
    %v1040 = vpop.f32.mrb[0].mxu0
    %v1041 = vpop.f32.mrb[0].mxu0
    %v1042 = vadd.f32 0.0, %v1041
    %v1043 = vpop.f32.mrb[0].mxu0
    %1044 = vmatprep.mubr.bf16.mxu0 0
    %1045 = vmatmul.mubr.bf16.gmra.mrb[0].mxu0 %v905
    %v1046 = vpop.f32.mrb[0].mxu0
    %v1047 = vadd.f32 0.0, %v1046
    %v1048 = vpop.f32.mrb[0].mxu0
    %v1049 = vpop.f32.mrb[0].mxu0
    %v1050 = vadd.f32 0.0, %v1049
    %v1051 = vpop.f32.mrb[0].mxu0
    %1052 = vmatprep.mubr.bf16.mxu0 0
    %1053 = vmatmul.mubr.bf16.gmra.mrb[0].mxu0 %v906
    %v1054 = vpop.f32.mrb[0].mxu0
    %v1055 = vadd.f32 0.0, %v1054
    %v1056 = vpop.f32.mrb[0].mxu0
    %v1057 = vpop.f32.mrb[0].mxu0
    %v1058 = vadd.f32 0.0, %v1057
    %v1059 = vpop.f32.mrb[0].mxu0
    %1060 = vmatprep.mubr.bf16.mxu0 0
    %1061 = vmatmul.mubr.bf16.gmra.mrb[0].mxu0 %v907
    %v1062 = vpop.f32.mrb[0].mxu0
    %v1063 = vadd.f32 0.0, %v1062
    %v1064 = vpop.f32.mrb[0].mxu0
    %v1065 = vpop.f32.mrb[0].mxu0
    %v1066 = vadd.f32 0.0, %v1065
    %v1067 = vpop.f32.mrb[0].mxu0
    %1068 = vdwg.mxu0
    %v1069 = vpack.c.bf16 %v1010, %v1007
    %v1070 = vpack.c.bf16 %v1018, %v1015
    %v1071 = vpack.c.bf16 %v1026, %v1023
    %v1072 = vpack.c.bf16 %v1034, %v1031
    %v1073 = vpack.c.bf16 %v1042, %v1039
    %v1074 = vpack.c.bf16 %v1050, %v1047
    %v1075 = vpack.c.bf16 %v1058, %v1055
    %v1076 = vpack.c.bf16 %v1066, %v1063
    %1077 = vmatprep.subr.bf16.mxu0 0
    %1078 = vmatpush1.bf16.msra.mxu0 %v1069
    %1079 = vmatprep.subr.bf16.mxu0 0
    %1080 = vmatpush1.bf16.msra.mxu0 %v1070
    %1081 = vmatprep.subr.bf16.mxu0 0
    %1082 = vmatpush1.bf16.msra.mxu0 %v1071
    %1083 = vmatprep.subr.bf16.mxu0 0
    %1084 = vmatpush1.bf16.msra.mxu0 %v1072
    %1085 = vmatprep.subr.bf16.mxu0 0
    %1086 = vmatpush1.bf16.msra.mxu0 %v1073
    %1087 = vmatprep.subr.bf16.mxu0 0
    %1088 = vmatpush1.bf16.msra.mxu0 %v1074
    %1089 = vmatprep.subr.bf16.mxu0 0
    %1090 = vmatpush1.bf16.msra.mxu0 %v1075
    %1091 = vmatprep.subr.bf16.mxu0 0
    %1092 = vmatpush1.bf16.msra.mxu0 %v1076
    %1093 = vmatprep.subr.bf16.mxu0 0
    %1094 = vmatpush1.bf16.msra.mxu0 0
    %1095 = vmatprep.subr.bf16.mxu0 0
    %1096 = vmatpush1.bf16.msra.mxu0 0
    %1097 = vmatprep.subr.bf16.mxu0 0
    %1098 = vmatpush1.bf16.msra.mxu0 0
    %1099 = vmatprep.subr.bf16.mxu0 0
    %1100 = vmatpush1.bf16.msra.mxu0 0
    %1101 = vmatprep.subr.bf16.mxu0 0
    %1102 = vmatpush1.bf16.msra.mxu0 0
    %1103 = vmatprep.subr.bf16.mxu0 0
    %1104 = vmatpush1.bf16.msra.mxu0 0
    %1105 = vmatprep.subr.bf16.mxu0 0
    %1106 = vmatpush1.bf16.msra.mxu0 0
    %1107 = vmatprep.subr.bf16.mxu0 0
    %1108 = vmatpush1.bf16.msra.mxu0 0
    %1109 = vmatprep.mubr.bf16.mxu0 0
    %1110 = vmatmul.mubr.bf16.gmra.mrb[0].mxu0 %v389
    %v1111 = vpop.f32.mrb[0].mxu0
    %v1112 = vadd.f32 0.0, %v1111
    %v1113 = vpop.f32.mrb[0].mxu0
    %v1114 = vpop.f32.mrb[0].mxu0
    %v1115 = vadd.f32 0.0, %v1114
    %v1116 = vpop.f32.mrb[0].mxu0
    %1117 = vmatprep.mubr.bf16.mxu0 0
    %1118 = vmatmul.mubr.bf16.gmra.mrb[0].mxu0 %v390
    %v1119 = vpop.f32.mrb[0].mxu0
    %v1120 = vadd.f32 0.0, %v1119
    %v1121 = vpop.f32.mrb[0].mxu0
    %v1122 = vpop.f32.mrb[0].mxu0
    %v1123 = vadd.f32 0.0, %v1122
    %v1124 = vpop.f32.mrb[0].mxu0
    %1125 = vmatprep.mubr.bf16.mxu0 0
    %1126 = vmatmul.mubr.bf16.gmra.mrb[0].mxu0 %v391
    %v1127 = vpop.f32.mrb[0].mxu0
    %v1128 = vadd.f32 0.0, %v1127
    %v1129 = vpop.f32.mrb[0].mxu0
    %v1130 = vpop.f32.mrb[0].mxu0
    %v1131 = vadd.f32 0.0, %v1130
    %v1132 = vpop.f32.mrb[0].mxu0
    %1133 = vmatprep.mubr.bf16.mxu0 0
    %1134 = vmatmul.mubr.bf16.gmra.mrb[0].mxu0 %v392
    %v1135 = vpop.f32.mrb[0].mxu0
    %v1136 = vadd.f32 0.0, %v1135
    %v1137 = vpop.f32.mrb[0].mxu0
    %v1138 = vpop.f32.mrb[0].mxu0
    %v1139 = vadd.f32 0.0, %v1138
    %v1140 = vpop.f32.mrb[0].mxu0
    %1141 = vmatprep.mubr.bf16.mxu0 0
    %1142 = vmatmul.mubr.bf16.gmra.mrb[0].mxu0 %v393
    %v1143 = vpop.f32.mrb[0].mxu0
    %v1144 = vadd.f32 0.0, %v1143
    %v1145 = vpop.f32.mrb[0].mxu0
    %v1146 = vpop.f32.mrb[0].mxu0
    %v1147 = vadd.f32 0.0, %v1146
    %v1148 = vpop.f32.mrb[0].mxu0
    %1149 = vmatprep.mubr.bf16.mxu0 0
    %1150 = vmatmul.mubr.bf16.gmra.mrb[0].mxu0 %v394
    %v1151 = vpop.f32.mrb[0].mxu0
    %v1152 = vadd.f32 0.0, %v1151
    %v1153 = vpop.f32.mrb[0].mxu0
    %v1154 = vpop.f32.mrb[0].mxu0
    %v1155 = vadd.f32 0.0, %v1154
    %v1156 = vpop.f32.mrb[0].mxu0
    %1157 = vmatprep.mubr.bf16.mxu0 0
    %1158 = vmatmul.mubr.bf16.gmra.mrb[0].mxu0 %v395
    %v1159 = vpop.f32.mrb[0].mxu0
    %v1160 = vadd.f32 0.0, %v1159
    %v1161 = vpop.f32.mrb[0].mxu0
    %v1162 = vpop.f32.mrb[0].mxu0
    %v1163 = vadd.f32 0.0, %v1162
    %v1164 = vpop.f32.mrb[0].mxu0
    %1165 = vmatprep.mubr.bf16.mxu0 0
    %1166 = vmatmul.mubr.bf16.gmra.mrb[0].mxu0 %v396
    %v1167 = vpop.f32.mrb[0].mxu0
    %v1168 = vadd.f32 0.0, %v1167
    %v1169 = vpop.f32.mrb[0].mxu0
    %v1170 = vpop.f32.mrb[0].mxu0
    %v1171 = vadd.f32 0.0, %v1170
    %v1172 = vpop.f32.mrb[0].mxu0
    %1173 = vdwg.mxu0
    %v1174 = vld [vmem:[%s9] sm:$0x1]
    %v1176 = vlaneseq
    %v1177 = vshrl.u32 %v1176, 7
    %v1178 = vsub.s32 0, %v1177
    %v1179 = vrot.slane %v1174, %v1178
    %v1181 = vmul.f32 %v1112, %v1179
    %v1182 = vmul.f32 %v1115, %v1179
    %v1183 = vmul.f32 %v1120, %v1179
    %v1184 = vmul.f32 %v1123, %v1179
    %v1185 = vmul.f32 %v1128, %v1179
    %v1186 = vmul.f32 %v1131, %v1179
    %v1187 = vmul.f32 %v1136, %v1179
    %v1188 = vmul.f32 %v1139, %v1179
    %v1189 = vmul.f32 %v1144, %v1179
    %v1190 = vmul.f32 %v1147, %v1179
    %v1191 = vmul.f32 %v1152, %v1179
    %v1192 = vmul.f32 %v1155, %v1179
    %v1193 = vmul.f32 %v1160, %v1179
    %v1194 = vmul.f32 %v1163, %v1179
    %v1195 = vmul.f32 %v1168, %v1179
    %v1196 = vmul.f32 %v1171, %v1179
    %v1197 = vld [vmem:[%s10] sm:$0x1]
    %v1199 = vlaneseq
    %v1200 = vshrl.u32 %v1199, 7
    %v1201 = vsub.s32 0, %v1200
    %v1202 = vrot.slane %v1197, %v1201
    %v1204 = vadd.f32 %v1181, %v1202
    %v1205 = vadd.f32 %v1182, %v1202
    %v1206 = vadd.f32 %v1183, %v1202
    %v1207 = vadd.f32 %v1184, %v1202
    %v1208 = vadd.f32 %v1185, %v1202
    %v1209 = vadd.f32 %v1186, %v1202
    %v1210 = vadd.f32 %v1187, %v1202
    %v1211 = vadd.f32 %v1188, %v1202
    %v1212 = vadd.f32 %v1189, %v1202
    %v1213 = vadd.f32 %v1190, %v1202
    %v1214 = vadd.f32 %v1191, %v1202
    %v1215 = vadd.f32 %v1192, %v1202
    %v1216 = vadd.f32 %v1193, %v1202
    %v1217 = vadd.f32 %v1194, %v1202
    %v1218 = vadd.f32 %v1195, %v1202
    %v1219 = vadd.f32 %v1196, %v1202
    %1220 = vmax.xlane.f32.xlu0 %v1204
    %v1221 = vpop.xlane.xlu0 %1220
    %1222 = vmax.xlane.f32.xlu0 %v1205
    %v1223 = vpop.xlane.xlu0 %1222
    %1224 = vmax.xlane.f32.xlu0 %v1206
    %v1225 = vpop.xlane.xlu0 %1224
    %1226 = vmax.xlane.f32.xlu0 %v1207
    %v1227 = vpop.xlane.xlu0 %1226
    %1228 = vmax.xlane.f32.xlu0 %v1208
    %v1229 = vpop.xlane.xlu0 %1228
    %1230 = vmax.xlane.f32.xlu0 %v1209
    %v1231 = vpop.xlane.xlu0 %1230
    %1232 = vmax.xlane.f32.xlu0 %v1210
    %v1233 = vpop.xlane.xlu0 %1232
    %1234 = vmax.xlane.f32.xlu0 %v1211
    %v1235 = vpop.xlane.xlu0 %1234
    %1236 = vmax.xlane.f32.xlu0 %v1212
    %v1237 = vpop.xlane.xlu0 %1236
    %1238 = vmax.xlane.f32.xlu0 %v1213
    %v1239 = vpop.xlane.xlu0 %1238
    %1240 = vmax.xlane.f32.xlu0 %v1214
    %v1241 = vpop.xlane.xlu0 %1240
    %1242 = vmax.xlane.f32.xlu0 %v1215
    %v1243 = vpop.xlane.xlu0 %1242
    %1244 = vmax.xlane.f32.xlu0 %v1216
    %v1245 = vpop.xlane.xlu0 %1244
    %1246 = vmax.xlane.f32.xlu0 %v1217
    %v1247 = vpop.xlane.xlu0 %1246
    %1248 = vmax.xlane.f32.xlu0 %v1218
    %v1249 = vpop.xlane.xlu0 %1248
    %1250 = vmax.xlane.f32.xlu0 %v1219
    %v1251 = vpop.xlane.xlu0 %1250
    %v1252 = vsub.f32 %v1204, %v1221
    %v1253 = vsub.f32 %v1205, %v1223
    %v1254 = vsub.f32 %v1206, %v1225
    %v1255 = vsub.f32 %v1207, %v1227
    %v1256 = vsub.f32 %v1208, %v1229
    %v1257 = vsub.f32 %v1209, %v1231
    %v1258 = vsub.f32 %v1210, %v1233
    %v1259 = vsub.f32 %v1211, %v1235
    %v1260 = vsub.f32 %v1212, %v1237
    %v1261 = vsub.f32 %v1213, %v1239
    %v1262 = vsub.f32 %v1214, %v1241
    %v1263 = vsub.f32 %v1215, %v1243
    %v1264 = vsub.f32 %v1216, %v1245
    %v1265 = vsub.f32 %v1217, %v1247
    %v1266 = vsub.f32 %v1218, %v1249
    %v1267 = vsub.f32 %v1219, %v1251
    %v1268 = vmul.f32 %v1252, 1.442695
    %v1269 = vpow.pop %v1268
    %v1270 = vmul.f32 %v1253, 1.442695
    %v1271 = vpow.pop %v1270
    %v1272 = vmul.f32 %v1254, 1.442695
    %v1273 = vpow.pop %v1272
    %v1274 = vmul.f32 %v1255, 1.442695
    %v1275 = vpow.pop %v1274
    %v1276 = vmul.f32 %v1256, 1.442695
    %v1277 = vpow.pop %v1276
    %v1278 = vmul.f32 %v1257, 1.442695
    %v1279 = vpow.pop %v1278
    %v1280 = vmul.f32 %v1258, 1.442695
    %v1281 = vpow.pop %v1280
    %v1282 = vmul.f32 %v1259, 1.442695
    %v1283 = vpow.pop %v1282
    %v1284 = vmul.f32 %v1260, 1.442695
    %v1285 = vpow.pop %v1284
    %v1286 = vmul.f32 %v1261, 1.442695
    %v1287 = vpow.pop %v1286
    %v1288 = vmul.f32 %v1262, 1.442695
    %v1289 = vpow.pop %v1288
    %v1290 = vmul.f32 %v1263, 1.442695
    %v1291 = vpow.pop %v1290
    %v1292 = vmul.f32 %v1264, 1.442695
    %v1293 = vpow.pop %v1292
    %v1294 = vmul.f32 %v1265, 1.442695
    %v1295 = vpow.pop %v1294
    %v1296 = vmul.f32 %v1266, 1.442695
    %v1297 = vpow.pop %v1296
    %v1298 = vmul.f32 %v1267, 1.442695
    %v1299 = vpow.pop %v1298
    %1300 = vadd.xlane.f32.xlu0 %v1269
    %v1301 = vpop.xlane.xlu0 %1300
    %1302 = vadd.xlane.f32.xlu0 %v1271
    %v1303 = vpop.xlane.xlu0 %1302
    %1304 = vadd.xlane.f32.xlu0 %v1273
    %v1305 = vpop.xlane.xlu0 %1304
    %1306 = vadd.xlane.f32.xlu0 %v1275
    %v1307 = vpop.xlane.xlu0 %1306
    %1308 = vadd.xlane.f32.xlu0 %v1277
    %v1309 = vpop.xlane.xlu0 %1308
    %1310 = vadd.xlane.f32.xlu0 %v1279
    %v1311 = vpop.xlane.xlu0 %1310
    %1312 = vadd.xlane.f32.xlu0 %v1281
    %v1313 = vpop.xlane.xlu0 %1312
    %1314 = vadd.xlane.f32.xlu0 %v1283
    %v1315 = vpop.xlane.xlu0 %1314
    %1316 = vadd.xlane.f32.xlu0 %v1285
    %v1317 = vpop.xlane.xlu0 %1316
    %1318 = vadd.xlane.f32.xlu0 %v1287
    %v1319 = vpop.xlane.xlu0 %1318
    %1320 = vadd.xlane.f32.xlu0 %v1289
    %v1321 = vpop.xlane.xlu0 %1320
    %1322 = vadd.xlane.f32.xlu0 %v1291
    %v1323 = vpop.xlane.xlu0 %1322
    %1324 = vadd.xlane.f32.xlu0 %v1293
    %v1325 = vpop.xlane.xlu0 %1324
    %1326 = vadd.xlane.f32.xlu0 %v1295
    %v1327 = vpop.xlane.xlu0 %1326
    %1328 = vadd.xlane.f32.xlu0 %v1297
    %v1329 = vpop.xlane.xlu0 %1328
    %1330 = vadd.xlane.f32.xlu0 %v1299
    %v1331 = vpop.xlane.xlu0 %1330
    %v1332 = vlog2.pop %v1301
    %v1333 = vmul.f32 %v1332, 0.6931472
    %v1334 = vlog2.pop %v1303
    %v1335 = vmul.f32 %v1334, 0.6931472
    %v1336 = vlog2.pop %v1305
    %v1337 = vmul.f32 %v1336, 0.6931472
    %v1338 = vlog2.pop %v1307
    %v1339 = vmul.f32 %v1338, 0.6931472
    %v1340 = vlog2.pop %v1309
    %v1341 = vmul.f32 %v1340, 0.6931472
    %v1342 = vlog2.pop %v1311
    %v1343 = vmul.f32 %v1342, 0.6931472
    %v1344 = vlog2.pop %v1313
    %v1345 = vmul.f32 %v1344, 0.6931472
    %v1346 = vlog2.pop %v1315
    %v1347 = vmul.f32 %v1346, 0.6931472
    %v1348 = vlog2.pop %v1317
    %v1349 = vmul.f32 %v1348, 0.6931472
    %v1350 = vlog2.pop %v1319
    %v1351 = vmul.f32 %v1350, 0.6931472
    %v1352 = vlog2.pop %v1321
    %v1353 = vmul.f32 %v1352, 0.6931472
    %v1354 = vlog2.pop %v1323
    %v1355 = vmul.f32 %v1354, 0.6931472
    %v1356 = vlog2.pop %v1325
    %v1357 = vmul.f32 %v1356, 0.6931472
    %v1358 = vlog2.pop %v1327
    %v1359 = vmul.f32 %v1358, 0.6931472
    %v1360 = vlog2.pop %v1329
    %v1361 = vmul.f32 %v1360, 0.6931472
    %v1362 = vlog2.pop %v1331
    %v1363 = vmul.f32 %v1362, 0.6931472
    %v1364 = vsub.f32 %v1252, %v1333
    %v1365 = vsub.f32 %v1253, %v1335
    %v1366 = vsub.f32 %v1254, %v1337
    %v1367 = vsub.f32 %v1255, %v1339
    %v1368 = vsub.f32 %v1256, %v1341
    %v1369 = vsub.f32 %v1257, %v1343
    %v1370 = vsub.f32 %v1258, %v1345
    %v1371 = vsub.f32 %v1259, %v1347
    %v1372 = vsub.f32 %v1260, %v1349
    %v1373 = vsub.f32 %v1261, %v1351
    %v1374 = vsub.f32 %v1262, %v1353
    %v1375 = vsub.f32 %v1263, %v1355
    %v1376 = vsub.f32 %v1264, %v1357
    %v1377 = vsub.f32 %v1265, %v1359
    %v1378 = vsub.f32 %v1266, %v1361
    %v1379 = vsub.f32 %v1267, %v1363
    %1380 = vst [vmem:[#allocation11] sm:$0xff] %v1364
    %1381 = vst [vmem:[#allocation11 + $0x8] sm:$0xff] %v1365
    %1382 = vst [vmem:[#allocation11 + $0x10] sm:$0xff] %v1366
    %1383 = vst [vmem:[#allocation11 + $0x18] sm:$0xff] %v1367
    %1384 = vst [vmem:[#allocation11 + $0x20] sm:$0xff] %v1368
    %1385 = vst [vmem:[#allocation11 + $0x28] sm:$0xff] %v1369
    %1386 = vst [vmem:[#allocation11 + $0x30] sm:$0xff] %v1370
    %1387 = vst [vmem:[#allocation11 + $0x38] sm:$0xff] %v1371
    %1388 = vst [vmem:[#allocation11 + $0x40] sm:$0xff] %v1372
    %1389 = vst [vmem:[#allocation11 + $0x48] sm:$0xff] %v1373
    %1390 = vst [vmem:[#allocation11 + $0x50] sm:$0xff] %v1374
    %1391 = vst [vmem:[#allocation11 + $0x58] sm:$0xff] %v1375
    %1392 = vst [vmem:[#allocation11 + $0x60] sm:$0xff] %v1376
    %1393 = vst [vmem:[#allocation11 + $0x68] sm:$0xff] %v1377
    %1394 = vst [vmem:[#allocation11 + $0x70] sm:$0xff] %v1378
    %1395 = vst [vmem:[#allocation11 + $0x78] sm:$0xff] %v1379
    // Predicated region
    $region66: #{tpu_custom_call.1} parent=1 // pred_check
      _
    $region67: #{tpu_custom_call.1} parent=1 // pred_check_branch
      %1397 = sbr.rel (0) target = $region69
    $region68: #{tpu_custom_call.1} parent=1 // pred_region
      %s1399 = ssub.s32 2048, 2048
      %1400 = vsyncadd [#allocation4], %s1399
      %s1401 = sshll.u32 [#allocation11], 4
      %s1402 = int_to_ptr.vmem [resolvable:$true] %s1401
      %1407 = dma.vmem_to_hbm [thread:$0]  %s1402, 2048, %s11, [#allocation4], 128, 128, 8
    $region69: #{tpu_custom_call.1} parent=1 // pred_fallthru
      _
    // Predicated region
    $region70: #{tpu_custom_call.1} parent=1 // pred_check
      _
    $region71: #{tpu_custom_call.1} parent=1 // pred_check_branch
      %1409 = sbr.rel (0) target = $region73
    $region72: #{tpu_custom_call.1} parent=1 // pred_region
      %1410 = dma.done [#allocation4], 2048
    $region73: #{tpu_custom_call.1} parent=1 // pred_fallthru
      _
    %1411 = vsyncpa [#allocation3], 1
    %1412 = vsyncpa [#allocation6], 1
    %1413 = vsyncpa [#allocation9], 1
    %1414 = vsyncpa [#allocation4], 1

</llo_original>
